<compile_context>
chip_gen: v7x
topology: tpu7x:2x2x1
jax: 0.10.0
libtpu: 0.0.40
codegen_flags: <defaults>
</compile_context>

<pallas_src>
import functools

import jax
import jax.numpy as jnp
from jax.experimental import pallas as pl
from jax.experimental.pallas import tpu as pltpu

_EPS = 1e-5  # nn.BatchNorm2d default eps


# ----------------------------- in-kernel helpers --------------------------- #

def _shifted_kstack(x, mask_top, mask_bot):
    """Build the K-stacked conv LHS: (rows, 3*WC_p) bf16 from a (rows, WC_p) f32 slab.

    Band dy=0 needs the input row at h-1 ("up"), dy=1 the row at h, dy=2 the row
    at h+1 ("down").  Each shift is a single sublane-shift pass (static slice +
    concat along rows); the per-image H-boundary zero padding is a per-row 0/1
    mask multiply.  No padded scratch, no unaligned-slice+reshape relayouts.
    """
    cdt = jnp.bfloat16
    up = jnp.concatenate([x[:1, :], x[:-1, :]], axis=0) * mask_top   # row r <- x[r-1]
    dn = jnp.concatenate([x[1:, :], x[-1:, :]], axis=0) * mask_bot   # row r <- x[r+1]
    return jnp.concatenate([up.astype(cdt), x.astype(cdt), dn.astype(cdt)], axis=-1)


def _bn_lane_dense(y, gamma_t, beta_t, fold, spread, inv_m, relu):
    """Training-mode BatchNorm on a lane-dense (rows, WC_p) f32 slab.

    One-pass biased stats (sum + sum-of-squares).  Per-lane sums are folded to
    per-channel sums with a (WC_p, C) 0/1 matmul and broadcast back per lane with
    its transpose (W x smaller weight than a dense (WC, WC) fold).  Padded lanes
    get gamma=beta=mean=var=0 -> output 0 (no NaN/inf).
    """
    s1 = jnp.sum(y, axis=0, keepdims=True)            # (1, WC_p)
    s2 = jnp.sum(y * y, axis=0, keepdims=True)        # (1, WC_p)
    mean = jnp.dot(jnp.dot(s1, fold, preferred_element_type=jnp.float32),
                   spread, preferred_element_type=jnp.float32) * inv_m
    ex2 = jnp.dot(jnp.dot(s2, fold, preferred_element_type=jnp.float32),
                  spread, preferred_element_type=jnp.float32) * inv_m
    # TODO(synk): switch to shifted/two-pass variance at production N*H*W to avoid
    #             E[x^2]-E[x]^2 cancellation; the clamp guards the toy sizes here.
    var = jnp.maximum(ex2 - mean * mean, 0.0)
    scale = jax.lax.rsqrt(var + _EPS) * gamma_t       # fold per-lane scalars first
    out = (y - mean) * scale + beta_t
    return jnp.maximum(out, 0.0) if relu else out


def _resblock_kernel(has_proj, width, x_ref, mt_ref, mb_ref,
                     w1_ref, g1_ref, be1_ref, w2_ref, g2_ref, be2_ref,
                     fold_ref, spread_ref, *rest):
    if has_proj:
        p_ref, gs_ref, bs_ref, out_ref = rest
    else:
        (out_ref,) = rest

    rows = x_ref.shape[0]                      # N*H
    inv_m = 1.0 / float(rows * width)          # 1 / (N*H*W)
    mt = mt_ref[...]                           # (rows, 1) 0/1 masks (h == 0 rows)
    mb = mb_ref[...]                           # (rows, 1) 0/1 masks (h == H-1 rows)
    fold = fold_ref[...]                       # (WC_out_p, C_f) 0/1 channel fold
    spread = spread_ref[...]                   # (C_f, WC_out_p) 0/1 lane broadcast

    x = x_ref[...]                             # (rows, WC_in_p) f32, lane-dense

    # ---- conv1 (3x3, pad 1, bias=False): ONE K-stacked bf16 MXU matmul ----
    y = jnp.dot(_shifted_kstack(x, mt, mb), w1_ref[...],
                preferred_element_type=jnp.float32)          # (rows, WC_out_p) f32
    y = _bn_lane_dense(y, g1_ref[...], be1_ref[...], fold, spread, inv_m, relu=True)

    # ---- conv2 (3x3, pad 1, bias=False) + bn2 ----
    y = jnp.dot(_shifted_kstack(y, mt, mb), w2_ref[...],
                preferred_element_type=jnp.float32)
    y = _bn_lane_dense(y, g2_ref[...], be2_ref[...], fold, spread, inv_m, relu=False)

    # ---- shortcut ----
    if has_proj:
        # 1x1 projection: bf16 operands, f32 accumulation (intentional quantization).
        s = jnp.dot(x.astype(jnp.bfloat16), p_ref[...],
                    preferred_element_type=jnp.float32)
        s = _bn_lane_dense(s, gs_ref[...], bs_ref[...], fold, spread, inv_m, relu=False)
    else:
        s = x                                   # identity (Cin == Cout), stays f32

    # ---- residual add + relu; dense 128-multiple lane store ----
    out_ref[...] = jnp.maximum(y + s, 0.0)


# ------------------------------- wrapper ----------------------------------- #

def _stacked_band_weights(w_hwio, width, in_pad, out_pad):
    """Fold W into banded matrices and stack the three H-bands along K.

    w_hwio: (3, 3, Cin, Cout).  Returns (3*in_pad, out_pad) bf16.  Band dy maps a
    lane-dense input row shifted by (dy-1) in H to the lane-dense output row;
    W-edge zero padding is encoded by the missing off-diagonal blocks and lane
    padding by zero rows/cols.
    """
    kh, kw, cin, cout = w_hwio.shape
    blocks = []
    for dy in range(kh):
        b = jnp.zeros((width * cin, width * cout), jnp.float32)
        for dx in range(kw):
            # sel[w_in, w_out] = 1  iff  w_in == w_out + dx - 1
            sel = jnp.eye(width, width, k=1 - dx, dtype=jnp.float32)
            b = b + jnp.kron(sel, w_hwio[dy, dx].astype(jnp.float32))
        blocks.append(jnp.pad(b, ((0, in_pad - width * cin),
                                  (0, out_pad - width * cout))))
    return jnp.concatenate(blocks, axis=0).astype(jnp.bfloat16)


def residual_block(x_nchw, params, stride=1):
    """Forward pass of ResidualBlock (training-mode BN).  x_nchw: (N, Cin, H, W)."""
    assert stride == 1  # TODO(synk): stride > 1 path not implemented in the kernel
    x = jnp.transpose(x_nchw, (0, 2, 3, 1)).astype(jnp.float32)    # NHWC
    n, h, w, c_in = x.shape
    c_out = params["w1"].shape[0]
    has_proj = ("ws" in params)
    if not has_proj:
        assert c_in == c_out, "identity shortcut requires in_channels == out_channels"

    def pad128(v):
        return ((v + 127) // 128) * 128

    wc_in, wc_out = w * c_in, w * c_out
    wc_in_p, wc_out_p = pad128(wc_in), pad128(wc_out)
    rows = n * h

    # Lane-dense activations: row=(n,h), lane=(w,c); lanes zero-padded to x128.
    x_lane = jnp.pad(x.reshape(rows, wc_in), ((0, 0), (0, wc_in_p - wc_in)))

    # Per-image H-boundary masks for the shifted conv bands.
    hid = jnp.arange(rows, dtype=jnp.int32) % h
    mask_top = (hid != 0).astype(jnp.float32).reshape(rows, 1)
    mask_bot = (hid != h - 1).astype(jnp.float32).reshape(rows, 1)

    # torch OIHW -> HWIO, then K-stacked banded lane-dense bf16 matrices.
    w1 = jnp.transpose(params["w1"], (2, 3, 1, 0))                 # (3,3,Cin,Cout)
    w2 = jnp.transpose(params["w2"], (2, 3, 1, 0))                 # (3,3,Cout,Cout)
    wstk1 = _stacked_band_weights(w1, w, wc_in_p, wc_out_p)        # (3*WCin_p, WCout_p)
    wstk2 = _stacked_band_weights(w2, w, wc_out_p, wc_out_p)       # (3*WCout_p, WCout_p)

    def tile_lane(v):                                              # per-channel -> per-lane
        t = jnp.tile(v.reshape(1, c_out).astype(jnp.float32), (1, w))
        return jnp.pad(t, ((0, 0), (0, wc_out_p - wc_out)))        # zeros in padded lanes

    # BN stats: (WC_p, C) channel-fold + its transpose as the lane broadcast.
    c_f = max(c_out, 8)
    fold = jnp.tile(jnp.eye(c_out, c_f, dtype=jnp.float32), (w, 1))   # (W*Cout, C_f)
    fold = jnp.pad(fold, ((0, wc_out_p - wc_out), (0, 0)))            # (WC_out_p, C_f)
    spread = fold.T                                                   # (C_f, WC_out_p)

    inputs = [x_lane, mask_top, mask_bot,
              wstk1, tile_lane(params["g1"]), tile_lane(params["b1"]),
              wstk2, tile_lane(params["g2"]), tile_lane(params["b2"]),
              fold, spread]
    if has_proj:
        ws = jnp.transpose(params["ws"][:, :, 0, 0], (1, 0))          # (Cin, Cout)
        proj = jnp.kron(jnp.eye(w, dtype=jnp.float32), ws)            # (W*Cin, W*Cout)
        proj = jnp.pad(proj, ((0, wc_in_p - wc_in),
                              (0, wc_out_p - wc_out))).astype(jnp.bfloat16)
        inputs += [proj, tile_lane(params["gs"]), tile_lane(params["bs"])]

    # VMEM budget from the real footprint; capped at 48 MiB so the compiler keeps
    # headroom on v7x's 64 MiB physical VMEM (v5e/v6e have 128 MiB).
    in_bytes = sum(int(a.size) * a.dtype.itemsize for a in inputs)
    out_bytes = rows * wc_out_p * 4
    slab_bytes = rows * max(wc_in_p, wc_out_p) * 4
    temp_bytes = 10 * slab_bytes          # shifted slabs, K-stacked lhs, BN temps, shortcut
    vmem_limit = int(min(48 * 2**20,
                         max(16 * 2**20, in_bytes + out_bytes + temp_bytes)))

    out = pl.pallas_call(
        functools.partial(_resblock_kernel, has_proj, w),
        out_shape=jax.ShapeDtypeStruct((rows, wc_out_p), jnp.float32),
        in_specs=[pl.BlockSpec(memory_space=pltpu.MemorySpace.VMEM)] * len(inputs),
        out_specs=pl.BlockSpec(memory_space=pltpu.MemorySpace.VMEM),
        compiler_params=pltpu.CompilerParams(vmem_limit_bytes=vmem_limit),
    )(*inputs)

    out = out[:, :wc_out].reshape(n, h, w, c_out)                  # drop lane padding
    return jnp.transpose(out, (0, 3, 1, 2))                        # back to NCHW


# ---------------------- deterministic parameter init ----------------------- #

def init_params(key, in_channels, out_channels, stride=1):
    ks = jax.random.split(key, 9)
    p = {
        "w1": 0.1 * jax.random.normal(ks[0], (out_channels, in_channels, 3, 3), jnp.float32),
        "g1": 1.0 + 0.1 * jax.random.normal(ks[1], (out_channels,), jnp.float32),
        "b1": 0.1 * jax.random.normal(ks[2], (out_channels,), jnp.float32),
        "w2": 0.1 * jax.random.normal(ks[3], (out_channels, out_channels, 3, 3), jnp.float32),
        "g2": 1.0 + 0.1 * jax.random.normal(ks[4], (out_channels,), jnp.float32),
        "b2": 0.1 * jax.random.normal(ks[5], (out_channels,), jnp.float32),
    }
    if stride != 1 or in_channels != out_channels:
        p["ws"] = 0.1 * jax.random.normal(ks[6], (out_channels, in_channels, 1, 1), jnp.float32)
        p["gs"] = 1.0 + 0.1 * jax.random.normal(ks[7], (out_channels,), jnp.float32)
        p["bs"] = 0.1 * jax.random.normal(ks[8], (out_channels,), jnp.float32)
    return p


# ----------------------------- pure-JAX reference -------------------------- #

def _reference(x_nchw, p):
    x = jnp.transpose(x_nchw, (0, 2, 3, 1)).astype(jnp.float32)
    n, h, w, _ = x.shape

    def conv3x3(inp, w_oihw):
        wt = jnp.transpose(w_oihw, (2, 3, 1, 0))
        xp = jnp.pad(inp, ((0, 0), (1, 1), (1, 1), (0, 0)))
        co = wt.shape[-1]
        acc = jnp.zeros((n, h, w, co), jnp.float32)
        for dy in range(3):
            for dx in range(3):
                acc += jnp.einsum("nhwc,co->nhwo", xp[:, dy:dy + h, dx:dx + w, :], wt[dy, dx])
        return acc

    def bn(y, g, b):
        m = y.mean(axis=(0, 1, 2), keepdims=True)
        v = ((y - m) ** 2).mean(axis=(0, 1, 2), keepdims=True)
        return (y - m) * jax.lax.rsqrt(v + _EPS) * g + b

    out = jnp.maximum(bn(conv3x3(x, p["w1"]), p["g1"], p["b1"]), 0.0)
    out = bn(conv3x3(out, p["w2"]), p["g2"], p["b2"])
    if "ws" in p:
        s = jnp.einsum("nhwc,co->nhwo", x, jnp.transpose(p["ws"][:, :, 0, 0], (1, 0)))
        s = bn(s, p["gs"], p["bs"])
    else:
        s = x
    out = jnp.maximum(out + s, 0.0)
    return jnp.transpose(out, (0, 3, 1, 2))


# ----------------------------------- main ----------------------------------- #

if __name__ == "__main__":
    key = jax.random.PRNGKey(0)
    kx, kp1, kp2 = jax.random.split(key, 3)

    # bf16 matmul operands (f32 accumulation) -> compare against the f32 reference
    # with a correspondingly relaxed tolerance.
    ATOL = RTOL = 5e-2

    # Case 1: identity shortcut (in_channels == out_channels, stride = 1)
    x = jax.random.normal(kx, (2, 4, 16, 16), jnp.float32)
    p = init_params(kp1, 4, 4)
    out = residual_block(x, p)
    jax.block_until_ready(out)
    ref = _reference(x, p)
    assert out.shape == (2, 4, 16, 16)
    assert jnp.allclose(out, ref, atol=ATOL, rtol=RTOL), float(jnp.max(jnp.abs(out - ref)))

    # Case 2: projection shortcut (in_channels != out_channels, stride = 1)
    p2 = init_params(kp2, 4, 8)
    out2 = residual_block(x, p2)
    jax.block_until_ready(out2)
    ref2 = _reference(x, p2)
    assert out2.shape == (2, 8, 16, 16)
    assert jnp.allclose(out2, ref2, atol=ATOL, rtol=RTOL), float(jnp.max(jnp.abs(out2 - ref2)))

    print("KERNEL_OK")
</pallas_src>

<mosaic_0001>
module attributes {stable_mosaic.version = 11 : i64} {
  func.func @_resblock_kernel(%arg0: memref<32x128xf32, #tpu.memory_space<vmem>>, %arg1: memref<32x1xf32, #tpu.memory_space<vmem>>, %arg2: memref<32x1xf32, #tpu.memory_space<vmem>>, %arg3: memref<384x128xbf16, #tpu.memory_space<vmem>>, %arg4: memref<1x128xf32, #tpu.memory_space<vmem>>, %arg5: memref<1x128xf32, #tpu.memory_space<vmem>>, %arg6: memref<384x128xbf16, #tpu.memory_space<vmem>>, %arg7: memref<1x128xf32, #tpu.memory_space<vmem>>, %arg8: memref<1x128xf32, #tpu.memory_space<vmem>>, %arg9: memref<128x8xf32, #tpu.memory_space<vmem>>, %arg10: memref<8x128xf32, #tpu.memory_space<vmem>>, %arg11: memref<32x128xf32, #tpu.memory_space<vmem>>) attributes {dimension_semantics = [], scalar_prefetch = 0 : i64, scratch_operands = 0 : i64, tpu.core_type = #tpu.core_type<tc>} {
    %c0 = arith.constant 0 : index
    %c0_0 = arith.constant 0 : index
    %0 = vector.load %arg1[%c0, %c0_0] : memref<32x1xf32, #tpu.memory_space<vmem>>, vector<32x1xf32>
    %c0_1 = arith.constant 0 : index
    %c0_2 = arith.constant 0 : index
    %1 = vector.load %arg2[%c0_1, %c0_2] : memref<32x1xf32, #tpu.memory_space<vmem>>, vector<32x1xf32>
    %c0_3 = arith.constant 0 : index
    %c0_4 = arith.constant 0 : index
    %2 = vector.load %arg9[%c0_3, %c0_4] : memref<128x8xf32, #tpu.memory_space<vmem>>, vector<128x8xf32>
    %c0_5 = arith.constant 0 : index
    %c0_6 = arith.constant 0 : index
    %3 = vector.load %arg10[%c0_5, %c0_6] : memref<8x128xf32, #tpu.memory_space<vmem>>, vector<8x128xf32>
    %c0_7 = arith.constant 0 : index
    %c0_8 = arith.constant 0 : index
    %4 = vector.load %arg0[%c0_7, %c0_8] : memref<32x128xf32, #tpu.memory_space<vmem>>, vector<32x128xf32>
    %5 = vector.extract_strided_slice %4 {offsets = [0, 0], sizes = [1, 128], strides = [1, 1]} : vector<32x128xf32> to vector<1x128xf32>
    %6 = vector.extract_strided_slice %4 {offsets = [0, 0], sizes = [31, 128], strides = [1, 1]} : vector<32x128xf32> to vector<31x128xf32>
    %7 = tpu.concatenate %5, %6 in 0 : vector<1x128xf32>, vector<31x128xf32> -> vector<32x128xf32>
    %8 = vector.broadcast %0 : vector<32x1xf32> to vector<32x128xf32>
    %9 = arith.mulf %7, %8 : vector<32x128xf32>
    %10 = vector.extract_strided_slice %4 {offsets = [1, 0], sizes = [31, 128], strides = [1, 1]} : vector<32x128xf32> to vector<31x128xf32>
    %11 = vector.extract_strided_slice %4 {offsets = [31, 0], sizes = [1, 128], strides = [1, 1]} : vector<32x128xf32> to vector<1x128xf32>
    %12 = tpu.concatenate %10, %11 in 0 : vector<31x128xf32>, vector<1x128xf32> -> vector<32x128xf32>
    %13 = vector.broadcast %1 : vector<32x1xf32> to vector<32x128xf32>
    %14 = arith.mulf %12, %13 : vector<32x128xf32>
    %15 = arith.truncf %9 : vector<32x128xf32> to vector<32x128xbf16>
    %16 = arith.truncf %4 : vector<32x128xf32> to vector<32x128xbf16>
    %17 = arith.truncf %14 : vector<32x128xf32> to vector<32x128xbf16>
    %18 = tpu.concatenate %15, %16, %17 in 1 : vector<32x128xbf16>, vector<32x128xbf16>, vector<32x128xbf16> -> vector<32x384xbf16>
    %c0_9 = arith.constant 0 : index
    %c0_10 = arith.constant 0 : index
    %19 = vector.load %arg3[%c0_9, %c0_10] : memref<384x128xbf16, #tpu.memory_space<vmem>>, vector<384x128xbf16>
    %cst = arith.constant dense<0.000000e+00> : vector<32x128xf32>
    %20 = tpu.matmul %18, %19, %cst {dimension_numbers = #tpu.dot_dimension_numbers<[1], [0], [0], [1], [0, 0, 1, 1], [], []>} : vector<32x384xbf16>, vector<384x128xbf16>, vector<32x128xf32> -> vector<32x128xf32>
    %c0_11 = arith.constant 0 : index
    %c0_12 = arith.constant 0 : index
    %21 = vector.load %arg4[%c0_11, %c0_12] : memref<1x128xf32, #tpu.memory_space<vmem>>, vector<1x128xf32>
    %c0_13 = arith.constant 0 : index
    %c0_14 = arith.constant 0 : index
    %22 = vector.load %arg5[%c0_13, %c0_14] : memref<1x128xf32, #tpu.memory_space<vmem>>, vector<1x128xf32>
    %cst_15 = arith.constant dense<0.000000e+00> : vector<128xf32>
    %23 = vector.multi_reduction <add>, %20, %cst_15 [0] : vector<32x128xf32> to vector<128xf32>
    %24 = vector.shape_cast %23 : vector<128xf32> to vector<1x128xf32>
    %25 = arith.mulf %20, %20 : vector<32x128xf32>
    %cst_16 = arith.constant dense<0.000000e+00> : vector<128xf32>
    %26 = vector.multi_reduction <add>, %25, %cst_16 [0] : vector<32x128xf32> to vector<128xf32>
    %27 = vector.shape_cast %26 : vector<128xf32> to vector<1x128xf32>
    %cst_17 = arith.constant dense<0.000000e+00> : vector<1x8xf32>
    %28 = tpu.matmul %24, %2, %cst_17 {dimension_numbers = #tpu.dot_dimension_numbers<[1], [0], [0], [1], [0, 0, 1, 1], [], []>} : vector<1x128xf32>, vector<128x8xf32>, vector<1x8xf32> -> vector<1x8xf32>
    %cst_18 = arith.constant dense<0.000000e+00> : vector<1x128xf32>
    %29 = tpu.matmul %28, %3, %cst_18 {dimension_numbers = #tpu.dot_dimension_numbers<[1], [0], [0], [1], [0, 0, 1, 1], [], []>} : vector<1x8xf32>, vector<8x128xf32>, vector<1x128xf32> -> vector<1x128xf32>
    %cst_19 = arith.constant 0.001953125 : f32
    %30 = vector.broadcast %cst_19 : f32 to vector<1x128xf32>
    %31 = arith.mulf %29, %30 : vector<1x128xf32>
    %cst_20 = arith.constant dense<0.000000e+00> : vector<1x8xf32>
    %32 = tpu.matmul %27, %2, %cst_20 {dimension_numbers = #tpu.dot_dimension_numbers<[1], [0], [0], [1], [0, 0, 1, 1], [], []>} : vector<1x128xf32>, vector<128x8xf32>, vector<1x8xf32> -> vector<1x8xf32>
    %cst_21 = arith.constant dense<0.000000e+00> : vector<1x128xf32>
    %33 = tpu.matmul %32, %3, %cst_21 {dimension_numbers = #tpu.dot_dimension_numbers<[1], [0], [0], [1], [0, 0, 1, 1], [], []>} : vector<1x8xf32>, vector<8x128xf32>, vector<1x128xf32> -> vector<1x128xf32>
    %cst_22 = arith.constant 0.001953125 : f32
    %34 = vector.broadcast %cst_22 : f32 to vector<1x128xf32>
    %35 = arith.mulf %33, %34 : vector<1x128xf32>
    %36 = arith.mulf %31, %31 : vector<1x128xf32>
    %37 = arith.subf %35, %36 : vector<1x128xf32>
    %cst_23 = arith.constant 0.000000e+00 : f32
    %38 = vector.broadcast %cst_23 : f32 to vector<1x128xf32>
    %39 = arith.maximumf %37, %38 : vector<1x128xf32>
    %cst_24 = arith.constant 9.99999974E-6 : f32
    %40 = vector.broadcast %cst_24 : f32 to vector<1x128xf32>
    %41 = arith.addf %39, %40 : vector<1x128xf32>
    %42 = math.rsqrt %41 : vector<1x128xf32>
    %43 = arith.mulf %42, %21 : vector<1x128xf32>
    %44 = vector.broadcast %31 : vector<1x128xf32> to vector<32x128xf32>
    %45 = arith.subf %20, %44 : vector<32x128xf32>
    %46 = vector.broadcast %43 : vector<1x128xf32> to vector<32x128xf32>
    %47 = arith.mulf %45, %46 : vector<32x128xf32>
    %48 = vector.broadcast %22 : vector<1x128xf32> to vector<32x128xf32>
    %49 = arith.addf %47, %48 : vector<32x128xf32>
    %cst_25 = arith.constant 0.000000e+00 : f32
    %50 = vector.broadcast %cst_25 : f32 to vector<32x128xf32>
    %51 = arith.maximumf %49, %50 : vector<32x128xf32>
    %52 = vector.extract_strided_slice %51 {offsets = [0, 0], sizes = [1, 128], strides = [1, 1]} : vector<32x128xf32> to vector<1x128xf32>
    %53 = vector.extract_strided_slice %51 {offsets = [0, 0], sizes = [31, 128], strides = [1, 1]} : vector<32x128xf32> to vector<31x128xf32>
    %54 = tpu.concatenate %52, %53 in 0 : vector<1x128xf32>, vector<31x128xf32> -> vector<32x128xf32>
    %55 = vector.broadcast %0 : vector<32x1xf32> to vector<32x128xf32>
    %56 = arith.mulf %54, %55 : vector<32x128xf32>
    %57 = vector.extract_strided_slice %51 {offsets = [1, 0], sizes = [31, 128], strides = [1, 1]} : vector<32x128xf32> to vector<31x128xf32>
    %58 = vector.extract_strided_slice %51 {offsets = [31, 0], sizes = [1, 128], strides = [1, 1]} : vector<32x128xf32> to vector<1x128xf32>
    %59 = tpu.concatenate %57, %58 in 0 : vector<31x128xf32>, vector<1x128xf32> -> vector<32x128xf32>
    %60 = vector.broadcast %1 : vector<32x1xf32> to vector<32x128xf32>
    %61 = arith.mulf %59, %60 : vector<32x128xf32>
    %62 = arith.truncf %56 : vector<32x128xf32> to vector<32x128xbf16>
    %63 = arith.truncf %51 : vector<32x128xf32> to vector<32x128xbf16>
    %64 = arith.truncf %61 : vector<32x128xf32> to vector<32x128xbf16>
    %65 = tpu.concatenate %62, %63, %64 in 1 : vector<32x128xbf16>, vector<32x128xbf16>, vector<32x128xbf16> -> vector<32x384xbf16>
    %c0_26 = arith.constant 0 : index
    %c0_27 = arith.constant 0 : index
    %66 = vector.load %arg6[%c0_26, %c0_27] : memref<384x128xbf16, #tpu.memory_space<vmem>>, vector<384x128xbf16>
    %cst_28 = arith.constant dense<0.000000e+00> : vector<32x128xf32>
    %67 = tpu.matmul %65, %66, %cst_28 {dimension_numbers = #tpu.dot_dimension_numbers<[1], [0], [0], [1], [0, 0, 1, 1], [], []>} : vector<32x384xbf16>, vector<384x128xbf16>, vector<32x128xf32> -> vector<32x128xf32>
    %c0_29 = arith.constant 0 : index
    %c0_30 = arith.constant 0 : index
    %68 = vector.load %arg7[%c0_29, %c0_30] : memref<1x128xf32, #tpu.memory_space<vmem>>, vector<1x128xf32>
    %c0_31 = arith.constant 0 : index
    %c0_32 = arith.constant 0 : index
    %69 = vector.load %arg8[%c0_31, %c0_32] : memref<1x128xf32, #tpu.memory_space<vmem>>, vector<1x128xf32>
    %cst_33 = arith.constant dense<0.000000e+00> : vector<128xf32>
    %70 = vector.multi_reduction <add>, %67, %cst_33 [0] : vector<32x128xf32> to vector<128xf32>
    %71 = vector.shape_cast %70 : vector<128xf32> to vector<1x128xf32>
    %72 = arith.mulf %67, %67 : vector<32x128xf32>
    %cst_34 = arith.constant dense<0.000000e+00> : vector<128xf32>
    %73 = vector.multi_reduction <add>, %72, %cst_34 [0] : vector<32x128xf32> to vector<128xf32>
    %74 = vector.shape_cast %73 : vector<128xf32> to vector<1x128xf32>
    %cst_35 = arith.constant dense<0.000000e+00> : vector<1x8xf32>
    %75 = tpu.matmul %71, %2, %cst_35 {dimension_numbers = #tpu.dot_dimension_numbers<[1], [0], [0], [1], [0, 0, 1, 1], [], []>} : vector<1x128xf32>, vector<128x8xf32>, vector<1x8xf32> -> vector<1x8xf32>
    %cst_36 = arith.constant dense<0.000000e+00> : vector<1x128xf32>
    %76 = tpu.matmul %75, %3, %cst_36 {dimension_numbers = #tpu.dot_dimension_numbers<[1], [0], [0], [1], [0, 0, 1, 1], [], []>} : vector<1x8xf32>, vector<8x128xf32>, vector<1x128xf32> -> vector<1x128xf32>
    %cst_37 = arith.constant 0.001953125 : f32
    %77 = vector.broadcast %cst_37 : f32 to vector<1x128xf32>
    %78 = arith.mulf %76, %77 : vector<1x128xf32>
    %cst_38 = arith.constant dense<0.000000e+00> : vector<1x8xf32>
    %79 = tpu.matmul %74, %2, %cst_38 {dimension_numbers = #tpu.dot_dimension_numbers<[1], [0], [0], [1], [0, 0, 1, 1], [], []>} : vector<1x128xf32>, vector<128x8xf32>, vector<1x8xf32> -> vector<1x8xf32>
    %cst_39 = arith.constant dense<0.000000e+00> : vector<1x128xf32>
    %80 = tpu.matmul %79, %3, %cst_39 {dimension_numbers = #tpu.dot_dimension_numbers<[1], [0], [0], [1], [0, 0, 1, 1], [], []>} : vector<1x8xf32>, vector<8x128xf32>, vector<1x128xf32> -> vector<1x128xf32>
    %cst_40 = arith.constant 0.001953125 : f32
    %81 = vector.broadcast %cst_40 : f32 to vector<1x128xf32>
    %82 = arith.mulf %80, %81 : vector<1x128xf32>
    %83 = arith.mulf %78, %78 : vector<1x128xf32>
    %84 = arith.subf %82, %83 : vector<1x128xf32>
    %cst_41 = arith.constant 0.000000e+00 : f32
    %85 = vector.broadcast %cst_41 : f32 to vector<1x128xf32>
    %86 = arith.maximumf %84, %85 : vector<1x128xf32>
    %cst_42 = arith.constant 9.99999974E-6 : f32
    %87 = vector.broadcast %cst_42 : f32 to vector<1x128xf32>
    %88 = arith.addf %86, %87 : vector<1x128xf32>
    %89 = math.rsqrt %88 : vector<1x128xf32>
    %90 = arith.mulf %89, %68 : vector<1x128xf32>
    %91 = vector.broadcast %78 : vector<1x128xf32> to vector<32x128xf32>
    %92 = arith.subf %67, %91 : vector<32x128xf32>
    %93 = vector.broadcast %90 : vector<1x128xf32> to vector<32x128xf32>
    %94 = arith.mulf %92, %93 : vector<32x128xf32>
    %95 = vector.broadcast %69 : vector<1x128xf32> to vector<32x128xf32>
    %96 = arith.addf %94, %95 : vector<32x128xf32>
    %97 = arith.addf %96, %4 : vector<32x128xf32>
    %cst_43 = arith.constant 0.000000e+00 : f32
    %98 = vector.broadcast %cst_43 : f32 to vector<32x128xf32>
    %99 = arith.maximumf %97, %98 : vector<32x128xf32>
    %c0_44 = arith.constant 0 : index
    %c0_45 = arith.constant 0 : index
    %100 = vector.load %arg11[%c0_44, %c0_45] : memref<32x128xf32, #tpu.memory_space<vmem>>, vector<32x128xf32>
    tpu.vector_store %arg11[%c0_44, %c0_45], %99 {strides = array<i32>} : memref<32x128xf32, #tpu.memory_space<vmem>>, vector<32x128xf32>,
    return
  }
}

</mosaic_0001>

<llo_original>
// kernel: tpu_custom_call.1
$region0: #{tpu_custom_call.1}
  #allocation0 [shape = 'u32[]', space=smem, size = 0x4, offset = 0x4, fixed_abs, tag = 'smem constant byte address 0x4 - core index']
  #allocation1 [shape = 'u32[144,128]{1,0:T(1,128)}', space=vmem, size = 0x12000, scoped, tag = 'internal scratch']
  %s0 = inlined_call_operand.hbm [shape: f32[32,128], index: 0, kind: input, shape index: {}]
  %s1 = inlined_call_operand.vmem [shape: f32[32,1], index: 1, kind: input, shape index: {}]
  %s2 = inlined_call_operand.vmem [shape: f32[32,1], index: 2, kind: input, shape index: {}]
  %s3 = inlined_call_operand.vmem [shape: bf16[384,128], index: 3, kind: input, shape index: {}]
  %s4 = inlined_call_operand.vmem [shape: f32[1,128], index: 4, kind: input, shape index: {}]
  %s5 = inlined_call_operand.vmem [shape: f32[1,128], index: 5, kind: input, shape index: {}]
  %s6 = inlined_call_operand.hbm [shape: bf16[384,128], index: 6, kind: input, shape index: {}]
  %s7 = inlined_call_operand.vmem [shape: f32[1,128], index: 7, kind: input, shape index: {}]
  %s8 = inlined_call_operand.vmem [shape: f32[1,128], index: 8, kind: input, shape index: {}]
  %s9 = inlined_call_operand.vmem [shape: f32[128,8], index: 9, kind: input, shape index: {}]
  %s10 = inlined_call_operand.vmem [shape: f32[8,128], index: 10, kind: input, shape index: {}]
  %s11 = inlined_call_operand.hbm [shape: f32[32,128], index: 11, kind: output, shape index: {}]
  %s12 = sld [smem:[#allocation0]]
  $region62: #{tpu_custom_call.1} parent=0
    _
  %s14 = ssub.s32 1, %s12
  %s15 = scalar_select 0, %s14, %s12
  $region1: #{tpu_custom_call.1} parent=0
    #allocation2 [shape = 'u8[16384]{0}', space=vmem, size = 0x4000, scoped, tag = 'input window, operand 0, single buffered']
    #allocation3 [shape = 's32[1]{0}', space=sflag, size = 0x4, scoped, tag = 'scoped memory for tpu_custom_call.1']
    #allocation4 [shape = 's32[1]{0}', space=sflag, size = 0x4, scoped, tag = 'scoped memory for tpu_custom_call.1']
    #allocation5 [shape = 'u8[98304]{0}', space=vmem, size = 0x18000, scoped, tag = 'input window, operand 6, single buffered']
    #allocation6 [shape = 's32[1]{0}', space=sflag, size = 0x4, scoped, tag = 'scoped memory for tpu_custom_call.1']
    #allocation7 [shape = 'u8[16384]{0}', space=vmem, size = 0x4000, scoped, tag = 'output window, operand 0, single buffered']
    %16 = vsyncpa [#allocation3], 0
    %17 = vsyncpa [#allocation6], 0
    %18 = vsyncpa [#allocation4], 0
    // Predicated region
    $region2: #{tpu_custom_call.1} parent=1 // pred_check
      _
    $region3: #{tpu_custom_call.1} parent=1 // pred_check_branch
      %20 = sbr.rel (0) target = $region5
    $region4: #{tpu_custom_call.1} parent=1 // pred_region
      %s22 = ssub.s32 512, 512
      %23 = vsyncadd [#allocation3], %s22
      %s24 = sshll.u32 [#allocation2], 4
      %s25 = int_to_ptr.vmem [resolvable:$true] %s24
      %30 = dma.hbm_to_vmem [thread:$0]  %s0, 512, %s25, [#allocation3], 128, 128, 8
    $region5: #{tpu_custom_call.1} parent=1 // pred_fallthru
      _
    // Predicated region
    $region6: #{tpu_custom_call.1} parent=1 // pred_check
      _
    $region7: #{tpu_custom_call.1} parent=1 // pred_check_branch
      %32 = sbr.rel (0) target = $region9
    $region8: #{tpu_custom_call.1} parent=1 // pred_region
      _
    $region9: #{tpu_custom_call.1} parent=1 // pred_fallthru
      _
    // Predicated region
    $region10: #{tpu_custom_call.1} parent=1 // pred_check
      _
    $region11: #{tpu_custom_call.1} parent=1 // pred_check_branch
      %34 = sbr.rel (0) target = $region13
    $region12: #{tpu_custom_call.1} parent=1 // pred_region
      _
    $region13: #{tpu_custom_call.1} parent=1 // pred_fallthru
      _
    // Predicated region
    $region14: #{tpu_custom_call.1} parent=1 // pred_check
      _
    $region15: #{tpu_custom_call.1} parent=1 // pred_check_branch
      %36 = sbr.rel (0) target = $region17
    $region16: #{tpu_custom_call.1} parent=1 // pred_region
      _
    $region17: #{tpu_custom_call.1} parent=1 // pred_fallthru
      _
    // Predicated region
    $region18: #{tpu_custom_call.1} parent=1 // pred_check
      _
    $region19: #{tpu_custom_call.1} parent=1 // pred_check_branch
      %38 = sbr.rel (0) target = $region21
    $region20: #{tpu_custom_call.1} parent=1 // pred_region
      _
    $region21: #{tpu_custom_call.1} parent=1 // pred_fallthru
      _
    // Predicated region
    $region22: #{tpu_custom_call.1} parent=1 // pred_check
      _
    $region23: #{tpu_custom_call.1} parent=1 // pred_check_branch
      %40 = sbr.rel (0) target = $region25
    $region24: #{tpu_custom_call.1} parent=1 // pred_region
      _
    $region25: #{tpu_custom_call.1} parent=1 // pred_fallthru
      _
    // Predicated region
    $region26: #{tpu_custom_call.1} parent=1 // pred_check
      _
    $region27: #{tpu_custom_call.1} parent=1 // pred_check_branch
      %42 = sbr.rel (0) target = $region29
    $region28: #{tpu_custom_call.1} parent=1 // pred_region
      %s44 = ssub.s32 3072, 3072
      %45 = vsyncadd [#allocation6], %s44
      %s46 = sshll.u32 [#allocation5], 4
      %s47 = int_to_ptr.vmem [resolvable:$true] %s46
      %52 = dma.hbm_to_vmem [thread:$0]  %s6, 3072, %s47, [#allocation6], 64, 64, 4
    $region29: #{tpu_custom_call.1} parent=1 // pred_fallthru
      _
    // Predicated region
    $region30: #{tpu_custom_call.1} parent=1 // pred_check
      _
    $region31: #{tpu_custom_call.1} parent=1 // pred_check_branch
      %54 = sbr.rel (0) target = $region33
    $region32: #{tpu_custom_call.1} parent=1 // pred_region
      _
    $region33: #{tpu_custom_call.1} parent=1 // pred_fallthru
      _
    // Predicated region
    $region34: #{tpu_custom_call.1} parent=1 // pred_check
      _
    $region35: #{tpu_custom_call.1} parent=1 // pred_check_branch
      %56 = sbr.rel (0) target = $region37
    $region36: #{tpu_custom_call.1} parent=1 // pred_region
      _
    $region37: #{tpu_custom_call.1} parent=1 // pred_fallthru
      _
    // Predicated region
    $region38: #{tpu_custom_call.1} parent=1 // pred_check
      _
    $region39: #{tpu_custom_call.1} parent=1 // pred_check_branch
      %58 = sbr.rel (0) target = $region41
    $region40: #{tpu_custom_call.1} parent=1 // pred_region
      _
    $region41: #{tpu_custom_call.1} parent=1 // pred_fallthru
      _
    // Predicated region
    $region42: #{tpu_custom_call.1} parent=1 // pred_check
      _
    $region43: #{tpu_custom_call.1} parent=1 // pred_check_branch
      %60 = sbr.rel (0) target = $region45
    $region44: #{tpu_custom_call.1} parent=1 // pred_region
      _
    $region45: #{tpu_custom_call.1} parent=1 // pred_fallthru
      _
    // Predicated region
    $region46: #{tpu_custom_call.1} parent=1 // pred_check
      _
    $region47: #{tpu_custom_call.1} parent=1 // pred_check_branch
      %62 = sbr.rel (0) target = $region49
    $region48: #{tpu_custom_call.1} parent=1 // pred_region
      %63 = dma.done [#allocation3], 512
    $region49: #{tpu_custom_call.1} parent=1 // pred_fallthru
      _
    // Predicated region
    $region50: #{tpu_custom_call.1} parent=1 // pred_check
      _
    $region51: #{tpu_custom_call.1} parent=1 // pred_check_branch
      %65 = sbr.rel (0) target = $region53
    $region52: #{tpu_custom_call.1} parent=1 // pred_region
      %66 = dma.done [#allocation6], 3072
    $region53: #{tpu_custom_call.1} parent=1 // pred_fallthru
      _
    %v68 = vld [vmem:[%s1] sm:$0xff]
    %v69 = vld [vmem:[%s1 + $0x8] sm:$0xff]
    %v70 = vld [vmem:[%s1 + $0x10] sm:$0xff]
    %v71 = vld [vmem:[%s1 + $0x18] sm:$0xff]
    %v72 = vld [vmem:[%s2] sm:$0xff]
    %v73 = vld [vmem:[%s2 + $0x8] sm:$0xff]
    %v74 = vld [vmem:[%s2 + $0x10] sm:$0xff]
    %v75 = vld [vmem:[%s2 + $0x18] sm:$0xff]
    %v76 = vld [vmem:[%s9] sm:$0xff]
    %v77 = vld [vmem:[%s9 + $0x8] sm:$0xff]
    %v78 = vld [vmem:[%s9 + $0x10] sm:$0xff]
    %v79 = vld [vmem:[%s9 + $0x18] sm:$0xff]
    %v80 = vld [vmem:[%s9 + $0x20] sm:$0xff]
    %v81 = vld [vmem:[%s9 + $0x28] sm:$0xff]
    %v82 = vld [vmem:[%s9 + $0x30] sm:$0xff]
    %v83 = vld [vmem:[%s9 + $0x38] sm:$0xff]
    %v84 = vld [vmem:[%s9 + $0x40] sm:$0xff]
    %v85 = vld [vmem:[%s9 + $0x48] sm:$0xff]
    %v86 = vld [vmem:[%s9 + $0x50] sm:$0xff]
    %v87 = vld [vmem:[%s9 + $0x58] sm:$0xff]
    %v88 = vld [vmem:[%s9 + $0x60] sm:$0xff]
    %v89 = vld [vmem:[%s9 + $0x68] sm:$0xff]
    %v90 = vld [vmem:[%s9 + $0x70] sm:$0xff]
    %v91 = vld [vmem:[%s9 + $0x78] sm:$0xff]
    %v92 = vld [vmem:[%s10] sm:$0xff]
    %v93 = vld [vmem:[#allocation2] sm:$0xff]
    %v94 = vld [vmem:[#allocation2 + $0x8] sm:$0xff]
    %v95 = vld [vmem:[#allocation2 + $0x10] sm:$0xff]
    %v96 = vld [vmem:[#allocation2 + $0x18] sm:$0xff]
    %vm101 = vcmask 1040384
    %v102 = vrot.slane %v93, 7
    %v103 = vrot.slane %v94, 7
    %v104 = vsel %vm101, %v102, %v103
    %v105 = vrot.slane %v95, 7
    %v106 = vsel %vm101, %v103, %v105
    %v107 = vrot.slane %v96, 7
    %v108 = vsel %vm101, %v105, %v107
    %v113 = vsel %vm101, %v93, %v102
    %115 = vset.pattern.permute.xlu0 0
    %116 = vperm.xlu0 %115, %v68
    %v117 = vpop.permute.xlu0 %116
    %120 = vset.pattern.permute.xlu0 0
    %121 = vperm.xlu0 %120, %v69
    %v122 = vpop.permute.xlu0 %121
    %125 = vset.pattern.permute.xlu0 0
    %126 = vperm.xlu0 %125, %v70
    %v127 = vpop.permute.xlu0 %126
    %130 = vset.pattern.permute.xlu0 0
    %131 = vperm.xlu0 %130, %v71
    %v132 = vpop.permute.xlu0 %131
    %v134 = vmul.f32 %v113, %v117
    %v135 = vmul.f32 %v104, %v122
    %v136 = vmul.f32 %v106, %v127
    %v137 = vmul.f32 %v108, %v132
    %vm138 = vcmask 1046528
    %v139 = vrot.slane %v93, 1
    %v140 = vrot.slane %v94, 1
    %v141 = vsel %vm138, %v139, %v140
    %v142 = vrot.slane %v95, 1
    %v143 = vsel %vm138, %v140, %v142
    %v144 = vrot.slane %v96, 1
    %v145 = vsel %vm138, %v142, %v144
    %v150 = vsel %vm138, %v144, %v96
    %152 = vset.pattern.permute.xlu0 0
    %153 = vperm.xlu0 %152, %v72
    %v154 = vpop.permute.xlu0 %153
    %157 = vset.pattern.permute.xlu0 0
    %158 = vperm.xlu0 %157, %v73
    %v159 = vpop.permute.xlu0 %158
    %162 = vset.pattern.permute.xlu0 0
    %163 = vperm.xlu0 %162, %v74
    %v164 = vpop.permute.xlu0 %163
    %167 = vset.pattern.permute.xlu0 0
    %168 = vperm.xlu0 %167, %v75
    %v169 = vpop.permute.xlu0 %168
    %v171 = vmul.f32 %v141, %v154
    %v172 = vmul.f32 %v143, %v159
    %v173 = vmul.f32 %v145, %v164
    %v174 = vmul.f32 %v150, %v169
    %v175 = vpack.c.bf16 %v135, %v134
    %v176 = vpack.c.bf16 %v137, %v136
    %v177 = vpack.c.bf16 %v94, %v93
    %v178 = vpack.c.bf16 %v96, %v95
    %v179 = vpack.c.bf16 %v172, %v171
    %v180 = vpack.c.bf16 %v174, %v173
    %v181 = vld [vmem:[%s3] sm:$0xf]
    %v182 = vld [vmem:[%s3 + $0x4] sm:$0xf]
    %v183 = vld [vmem:[%s3 + $0x8] sm:$0xf]
    %v184 = vld [vmem:[%s3 + $0xc] sm:$0xf]
    %v185 = vld [vmem:[%s3 + $0x10] sm:$0xf]
    %v186 = vld [vmem:[%s3 + $0x14] sm:$0xf]
    %v187 = vld [vmem:[%s3 + $0x18] sm:$0xf]
    %v188 = vld [vmem:[%s3 + $0x1c] sm:$0xf]
    %v189 = vld [vmem:[%s3 + $0x20] sm:$0xf]
    %v190 = vld [vmem:[%s3 + $0x24] sm:$0xf]
    %v191 = vld [vmem:[%s3 + $0x28] sm:$0xf]
    %v192 = vld [vmem:[%s3 + $0x2c] sm:$0xf]
    %v193 = vld [vmem:[%s3 + $0x30] sm:$0xf]
    %v194 = vld [vmem:[%s3 + $0x34] sm:$0xf]
    %v195 = vld [vmem:[%s3 + $0x38] sm:$0xf]
    %v196 = vld [vmem:[%s3 + $0x3c] sm:$0xf]
    %v197 = vld [vmem:[%s3 + $0x40] sm:$0xf]
    %v198 = vld [vmem:[%s3 + $0x44] sm:$0xf]
    %v199 = vld [vmem:[%s3 + $0x48] sm:$0xf]
    %v200 = vld [vmem:[%s3 + $0x4c] sm:$0xf]
    %v201 = vld [vmem:[%s3 + $0x50] sm:$0xf]
    %v202 = vld [vmem:[%s3 + $0x54] sm:$0xf]
    %v203 = vld [vmem:[%s3 + $0x58] sm:$0xf]
    %v204 = vld [vmem:[%s3 + $0x5c] sm:$0xf]
    %v205 = vld [vmem:[%s3 + $0x60] sm:$0xf]
    %v206 = vld [vmem:[%s3 + $0x64] sm:$0xf]
    %v207 = vld [vmem:[%s3 + $0x68] sm:$0xf]
    %v208 = vld [vmem:[%s3 + $0x6c] sm:$0xf]
    %v209 = vld [vmem:[%s3 + $0x70] sm:$0xf]
    %v210 = vld [vmem:[%s3 + $0x74] sm:$0xf]
    %v211 = vld [vmem:[%s3 + $0x78] sm:$0xf]
    %v212 = vld [vmem:[%s3 + $0x7c] sm:$0xf]
    %v213 = vld [vmem:[%s3 + $0x80] sm:$0xf]
    %v214 = vld [vmem:[%s3 + $0x84] sm:$0xf]
    %v215 = vld [vmem:[%s3 + $0x88] sm:$0xf]
    %v216 = vld [vmem:[%s3 + $0x8c] sm:$0xf]
    %v217 = vld [vmem:[%s3 + $0x90] sm:$0xf]
    %v218 = vld [vmem:[%s3 + $0x94] sm:$0xf]
    %v219 = vld [vmem:[%s3 + $0x98] sm:$0xf]
    %v220 = vld [vmem:[%s3 + $0x9c] sm:$0xf]
    %v221 = vld [vmem:[%s3 + $0xa0] sm:$0xf]
    %v222 = vld [vmem:[%s3 + $0xa4] sm:$0xf]
    %v223 = vld [vmem:[%s3 + $0xa8] sm:$0xf]
    %v224 = vld [vmem:[%s3 + $0xac] sm:$0xf]
    %v225 = vld [vmem:[%s3 + $0xb0] sm:$0xf]
    %v226 = vld [vmem:[%s3 + $0xb4] sm:$0xf]
    %v227 = vld [vmem:[%s3 + $0xb8] sm:$0xf]
    %v228 = vld [vmem:[%s3 + $0xbc] sm:$0xf]
    %v277 = vunpack.c.l.b16 %v181
    %v278 = vunpack.c.l.b16 %v182
    %v279 = vunpack.c.l.b16 %v183
    %v280 = vunpack.c.l.b16 %v184
    %v281 = vunpack.c.l.b16 %v185
    %v282 = vunpack.c.l.b16 %v186
    %v283 = vunpack.c.l.b16 %v187
    %v284 = vunpack.c.l.b16 %v188
    %v285 = vunpack.c.l.b16 %v189
    %v286 = vunpack.c.l.b16 %v190
    %v287 = vunpack.c.l.b16 %v191
    %v288 = vunpack.c.l.b16 %v192
    %v289 = vunpack.c.l.b16 %v193
    %v290 = vunpack.c.l.b16 %v194
    %v291 = vunpack.c.l.b16 %v195
    %v292 = vunpack.c.l.b16 %v196
    %v293 = vunpack.c.l.b16 %v197
    %v294 = vunpack.c.l.b16 %v198
    %v295 = vunpack.c.l.b16 %v199
    %v296 = vunpack.c.l.b16 %v200
    %v297 = vunpack.c.l.b16 %v201
    %v298 = vunpack.c.l.b16 %v202
    %v299 = vunpack.c.l.b16 %v203
    %v300 = vunpack.c.l.b16 %v204
    %v301 = vunpack.c.l.b16 %v205
    %v302 = vunpack.c.l.b16 %v206
    %v303 = vunpack.c.l.b16 %v207
    %v304 = vunpack.c.l.b16 %v208
    %v305 = vunpack.c.l.b16 %v209
    %v306 = vunpack.c.l.b16 %v210
    %v307 = vunpack.c.l.b16 %v211
    %v308 = vunpack.c.l.b16 %v212
    %v309 = vunpack.c.l.b16 %v213
    %v310 = vunpack.c.l.b16 %v214
    %v311 = vunpack.c.l.b16 %v215
    %v312 = vunpack.c.l.b16 %v216
    %v313 = vunpack.c.l.b16 %v217
    %v314 = vunpack.c.l.b16 %v218
    %v315 = vunpack.c.l.b16 %v219
    %v316 = vunpack.c.l.b16 %v220
    %v317 = vunpack.c.l.b16 %v221
    %v318 = vunpack.c.l.b16 %v222
    %v319 = vunpack.c.l.b16 %v223
    %v320 = vunpack.c.l.b16 %v224
    %v321 = vunpack.c.l.b16 %v225
    %v322 = vunpack.c.l.b16 %v226
    %v323 = vunpack.c.l.b16 %v227
    %v324 = vunpack.c.l.b16 %v228
    %v325 = vpack.c.b16 %v278, %v277
    %v326 = vpack.c.b16 %v280, %v279
    %v327 = vpack.c.b16 %v282, %v281
    %v328 = vpack.c.b16 %v284, %v283
    %v329 = vpack.c.b16 %v286, %v285
    %v330 = vpack.c.b16 %v288, %v287
    %v331 = vpack.c.b16 %v290, %v289
    %v332 = vpack.c.b16 %v292, %v291
    %v333 = vpack.c.b16 %v294, %v293
    %v334 = vpack.c.b16 %v296, %v295
    %v335 = vpack.c.b16 %v298, %v297
    %v336 = vpack.c.b16 %v300, %v299
    %v337 = vpack.c.b16 %v302, %v301
    %v338 = vpack.c.b16 %v304, %v303
    %v339 = vpack.c.b16 %v306, %v305
    %v340 = vpack.c.b16 %v308, %v307
    %v341 = vpack.c.b16 %v310, %v309
    %v342 = vpack.c.b16 %v312, %v311
    %v343 = vpack.c.b16 %v314, %v313
    %v344 = vpack.c.b16 %v316, %v315
    %v345 = vpack.c.b16 %v318, %v317
    %v346 = vpack.c.b16 %v320, %v319
    %v347 = vpack.c.b16 %v322, %v321
    %v348 = vpack.c.b16 %v324, %v323
    %373 = vmatprep.subr.bf16.mxu0 0
    %374 = vmatpush1.bf16.msra.mxu0 %v325
    %375 = vmatprep.subr.bf16.mxu0 0
    %376 = vmatpush1.bf16.msra.mxu0 %v326
    %377 = vmatprep.subr.bf16.mxu0 0
    %378 = vmatpush1.bf16.msra.mxu0 %v327
    %379 = vmatprep.subr.bf16.mxu0 0
    %380 = vmatpush1.bf16.msra.mxu0 %v328
    %381 = vmatprep.subr.bf16.mxu0 0
    %382 = vmatpush1.bf16.msra.mxu0 %v329
    %383 = vmatprep.subr.bf16.mxu0 0
    %384 = vmatpush1.bf16.msra.mxu0 %v330
    %385 = vmatprep.subr.bf16.mxu0 0
    %386 = vmatpush1.bf16.msra.mxu0 %v331
    %387 = vmatprep.subr.bf16.mxu0 0
    %388 = vmatpush1.bf16.msra.mxu0 %v332
    %389 = vmatprep.subr.bf16.mxu0 0
    %390 = vmatpush1.bf16.msra.mxu0 %v333
    %391 = vmatprep.subr.bf16.mxu0 0
    %392 = vmatpush1.bf16.msra.mxu0 %v334
    %393 = vmatprep.subr.bf16.mxu0 0
    %394 = vmatpush1.bf16.msra.mxu0 %v335
    %395 = vmatprep.subr.bf16.mxu0 0
    %396 = vmatpush1.bf16.msra.mxu0 %v336
    %397 = vmatprep.subr.bf16.mxu0 0
    %398 = vmatpush1.bf16.msra.mxu0 %v337
    %399 = vmatprep.subr.bf16.mxu0 0
    %400 = vmatpush1.bf16.msra.mxu0 %v338
    %401 = vmatprep.subr.bf16.mxu0 0
    %402 = vmatpush1.bf16.msra.mxu0 %v339
    %403 = vmatprep.subr.bf16.mxu0 0
    %404 = vmatpush1.bf16.msra.mxu0 %v340
    %405 = vmatprep.mubr.bf16.mxu0 %v177
    %406 = vmatmul.mubr.bf16.gmra.mrb[0].mxu0 %v175
    %v407 = vpop.f32.mrb[0].mxu0
    %v408 = vadd.f32 0.0, %v407
    %v409 = vpop.f32.mrb[0].mxu0
    %v410 = vpop.f32.mrb[0].mxu0
    %v411 = vadd.f32 0.0, %v410
    %v412 = vpop.f32.mrb[0].mxu0
    %413 = vmatprep.mubr.bf16.mxu0 %v178
    %414 = vmatmul.mubr.bf16.gmra.mrb[0].mxu0 %v176
    %v415 = vpop.f32.mrb[0].mxu0
    %v416 = vadd.f32 0.0, %v415
    %v417 = vpop.f32.mrb[0].mxu0
    %v418 = vpop.f32.mrb[0].mxu0
    %v419 = vadd.f32 0.0, %v418
    %v420 = vpop.f32.mrb[0].mxu0
    %421 = vdwg.mxu0
    %422 = vmatprep.subr.bf16.mxu0 0
    %423 = vmatpush1.bf16.msra.mxu0 %v341
    %424 = vmatprep.subr.bf16.mxu0 0
    %425 = vmatpush1.bf16.msra.mxu0 %v342
    %426 = vmatprep.subr.bf16.mxu0 0
    %427 = vmatpush1.bf16.msra.mxu0 %v343
    %428 = vmatprep.subr.bf16.mxu0 0
    %429 = vmatpush1.bf16.msra.mxu0 %v344
    %430 = vmatprep.subr.bf16.mxu0 0
    %431 = vmatpush1.bf16.msra.mxu0 %v345
    %432 = vmatprep.subr.bf16.mxu0 0
    %433 = vmatpush1.bf16.msra.mxu0 %v346
    %434 = vmatprep.subr.bf16.mxu0 0
    %435 = vmatpush1.bf16.msra.mxu0 %v347
    %436 = vmatprep.subr.bf16.mxu0 0
    %437 = vmatpush1.bf16.msra.mxu0 %v348
    %438 = vmatprep.subr.bf16.mxu0 0
    %439 = vmatpush1.bf16.msra.mxu0 0
    %440 = vmatprep.subr.bf16.mxu0 0
    %441 = vmatpush1.bf16.msra.mxu0 0
    %442 = vmatprep.subr.bf16.mxu0 0
    %443 = vmatpush1.bf16.msra.mxu0 0
    %444 = vmatprep.subr.bf16.mxu0 0
    %445 = vmatpush1.bf16.msra.mxu0 0
    %446 = vmatprep.subr.bf16.mxu0 0
    %447 = vmatpush1.bf16.msra.mxu0 0
    %448 = vmatprep.subr.bf16.mxu0 0
    %449 = vmatpush1.bf16.msra.mxu0 0
    %450 = vmatprep.subr.bf16.mxu0 0
    %451 = vmatpush1.bf16.msra.mxu0 0
    %452 = vmatprep.subr.bf16.mxu0 0
    %453 = vmatpush1.bf16.msra.mxu0 0
    %454 = vmatprep.mubr.bf16.mxu0 0
    %455 = vmatmul.mubr.bf16.gmra.mrb[0].mxu0 %v179
    %v456 = vpop.f32.mrb[0].mxu0
    %v457 = vadd.f32 %v408, %v456
    %v458 = vpop.f32.mrb[0].mxu0
    %v459 = vpop.f32.mrb[0].mxu0
    %v460 = vadd.f32 %v411, %v459
    %v461 = vpop.f32.mrb[0].mxu0
    %462 = vmatprep.mubr.bf16.mxu0 0
    %463 = vmatmul.mubr.bf16.gmra.mrb[0].mxu0 %v180
    %v464 = vpop.f32.mrb[0].mxu0
    %v465 = vadd.f32 %v416, %v464
    %v466 = vpop.f32.mrb[0].mxu0
    %v467 = vpop.f32.mrb[0].mxu0
    %v468 = vadd.f32 %v419, %v467
    %v469 = vpop.f32.mrb[0].mxu0
    %470 = vdwg.mxu0
    %v471 = vld [vmem:[%s4] sm:$0x1]
    %v472 = vld [vmem:[%s5] sm:$0x1]
    %v473 = vadd.f32 %v457, %v460
    %v474 = vadd.f32 %v473, %v465
    %v475 = vadd.f32 %v474, %v468
    %v476 = vrot.slane %v475, 4
    %v477 = vadd.f32 %v475, %v476
    %v478 = vrot.slane %v477, 2
    %v479 = vadd.f32 %v477, %v478
    %v480 = vrot.slane %v479, 1
    %v481 = vadd.f32 %v479, %v480
    %v482 = vmul.f32 %v457, %v457
    %v483 = vmul.f32 %v460, %v460
    %v484 = vmul.f32 %v465, %v465
    %v485 = vmul.f32 %v468, %v468
    %v486 = vadd.f32 %v482, %v483
    %v487 = vadd.f32 %v486, %v484
    %v488 = vadd.f32 %v487, %v485
    %v489 = vrot.slane %v488, 4
    %v490 = vadd.f32 %v488, %v489
    %v491 = vrot.slane %v490, 2
    %v492 = vadd.f32 %v490, %v491
    %v493 = vrot.slane %v492, 1
    %v494 = vadd.f32 %v492, %v493
    %495 = vmatprep.subr.mxu0 0.0
    %496 = vmatpush1.msra.mxu0 %v76
    %497 = vmatprep.subr.mxu0 0.0
    %498 = vmatpush1.msra.mxu0 %v77
    %499 = vmatprep.subr.mxu0 0.0
    %500 = vmatpush1.msra.mxu0 %v78
    %501 = vmatprep.subr.mxu0 0.0
    %502 = vmatpush1.msra.mxu0 %v79
    %503 = vmatprep.subr.mxu0 0.0
    %504 = vmatpush1.msra.mxu0 %v80
    %505 = vmatprep.subr.mxu0 0.0
    %506 = vmatpush1.msra.mxu0 %v81
    %507 = vmatprep.subr.mxu0 0.0
    %508 = vmatpush1.msra.mxu0 %v82
    %509 = vmatprep.subr.mxu0 0.0
    %510 = vmatpush1.msra.mxu0 %v83
    %511 = vmatprep.subr.mxu0 0.0
    %512 = vmatpush1.msra.mxu0 %v84
    %513 = vmatprep.subr.mxu0 0.0
    %514 = vmatpush1.msra.mxu0 %v85
    %515 = vmatprep.subr.mxu0 0.0
    %516 = vmatpush1.msra.mxu0 %v86
    %517 = vmatprep.subr.mxu0 0.0
    %518 = vmatpush1.msra.mxu0 %v87
    %519 = vmatprep.subr.mxu0 0.0
    %520 = vmatpush1.msra.mxu0 %v88
    %521 = vmatprep.subr.mxu0 0.0
    %522 = vmatpush1.msra.mxu0 %v89
    %523 = vmatprep.subr.mxu0 0.0
    %524 = vmatpush1.msra.mxu0 %v90
    %525 = vmatprep.subr.mxu0 0.0
    %526 = vmatpush1.msra.mxu0 %v91
    %527 = vmatprep.subr.mxu0 0.0
    %528 = vmatpush1.msra.mxu0 0.0
    %529 = vmatprep.subr.mxu0 0.0
    %530 = vmatpush1.msra.mxu0 0.0
    %531 = vmatprep.subr.mxu0 0.0
    %532 = vmatpush1.msra.mxu0 0.0
    %533 = vmatprep.subr.mxu0 0.0
    %534 = vmatpush1.msra.mxu0 0.0
    %535 = vmatprep.subr.mxu0 0.0
    %536 = vmatpush1.msra.mxu0 0.0
    %537 = vmatprep.subr.mxu0 0.0
    %538 = vmatpush1.msra.mxu0 0.0
    %539 = vmatprep.subr.mxu0 0.0
    %540 = vmatpush1.msra.mxu0 0.0
    %541 = vmatprep.subr.mxu0 0.0
    %542 = vmatpush1.msra.mxu0 0.0
    %543 = vmatprep.subr.mxu0 0.0
    %544 = vmatpush1.msra.mxu0 0.0
    %545 = vmatprep.subr.mxu0 0.0
    %546 = vmatpush1.msra.mxu0 0.0
    %547 = vmatprep.subr.mxu0 0.0
    %548 = vmatpush1.msra.mxu0 0.0
    %549 = vmatprep.subr.mxu0 0.0
    %550 = vmatpush1.msra.mxu0 0.0
    %551 = vmatprep.subr.mxu0 0.0
    %552 = vmatpush1.msra.mxu0 0.0
    %553 = vmatprep.subr.mxu0 0.0
    %554 = vmatpush1.msra.mxu0 0.0
    %555 = vmatprep.subr.mxu0 0.0
    %556 = vmatpush1.msra.mxu0 0.0
    %557 = vmatprep.subr.mxu0 0.0
    %558 = vmatpush1.msra.mxu0 0.0
    %559 = vmatprep.mubr.f32.mxu0 0.0
    %560 = vmatmul.mubr.f32.gmra.mrb[0].mxu0 %v481
    %v561 = vpop.f32.mrb[0].mxu0
    %v562 = vadd.f32 0.0, %v561
    %v563 = vpop.f32.mrb[0].mxu0
    %564 = vdwg.mxu0
    %vm565 = vcmask 64512
    %v567 = vsel %vm565, %v562, 0
    %569 = vmatprep.subr.mxu0 0.0
    %570 = vmatpush1.msra.mxu0 %v92
    %571 = vmatprep.subr.mxu0 0.0
    %572 = vmatpush1.msra.mxu0 0.0
    %573 = vmatprep.subr.mxu0 0.0
    %574 = vmatpush1.msra.mxu0 0.0
    %575 = vmatprep.subr.mxu0 0.0
    %576 = vmatpush1.msra.mxu0 0.0
    %577 = vmatprep.subr.mxu0 0.0
    %578 = vmatpush1.msra.mxu0 0.0
    %579 = vmatprep.subr.mxu0 0.0
    %580 = vmatpush1.msra.mxu0 0.0
    %581 = vmatprep.subr.mxu0 0.0
    %582 = vmatpush1.msra.mxu0 0.0
    %583 = vmatprep.subr.mxu0 0.0
    %584 = vmatpush1.msra.mxu0 0.0
    %585 = vmatprep.subr.mxu0 0.0
    %586 = vmatpush1.msra.mxu0 0.0
    %587 = vmatprep.subr.mxu0 0.0
    %588 = vmatpush1.msra.mxu0 0.0
    %589 = vmatprep.subr.mxu0 0.0
    %590 = vmatpush1.msra.mxu0 0.0
    %591 = vmatprep.subr.mxu0 0.0
    %592 = vmatpush1.msra.mxu0 0.0
    %593 = vmatprep.subr.mxu0 0.0
    %594 = vmatpush1.msra.mxu0 0.0
    %595 = vmatprep.subr.mxu0 0.0
    %596 = vmatpush1.msra.mxu0 0.0
    %597 = vmatprep.subr.mxu0 0.0
    %598 = vmatpush1.msra.mxu0 0.0
    %599 = vmatprep.subr.mxu0 0.0
    %600 = vmatpush1.msra.mxu0 0.0
    %601 = vmatprep.subr.mxu0 0.0
    %602 = vmatpush1.msra.mxu0 0.0
    %603 = vmatprep.subr.mxu0 0.0
    %604 = vmatpush1.msra.mxu0 0.0
    %605 = vmatprep.subr.mxu0 0.0
    %606 = vmatpush1.msra.mxu0 0.0
    %607 = vmatprep.subr.mxu0 0.0
    %608 = vmatpush1.msra.mxu0 0.0
    %609 = vmatprep.subr.mxu0 0.0
    %610 = vmatpush1.msra.mxu0 0.0
    %611 = vmatprep.subr.mxu0 0.0
    %612 = vmatpush1.msra.mxu0 0.0
    %613 = vmatprep.subr.mxu0 0.0
    %614 = vmatpush1.msra.mxu0 0.0
    %615 = vmatprep.subr.mxu0 0.0
    %616 = vmatpush1.msra.mxu0 0.0
    %617 = vmatprep.subr.mxu0 0.0
    %618 = vmatpush1.msra.mxu0 0.0
    %619 = vmatprep.subr.mxu0 0.0
    %620 = vmatpush1.msra.mxu0 0.0
    %621 = vmatprep.subr.mxu0 0.0
    %622 = vmatpush1.msra.mxu0 0.0
    %623 = vmatprep.subr.mxu0 0.0
    %624 = vmatpush1.msra.mxu0 0.0
    %625 = vmatprep.subr.mxu0 0.0
    %626 = vmatpush1.msra.mxu0 0.0
    %627 = vmatprep.subr.mxu0 0.0
    %628 = vmatpush1.msra.mxu0 0.0
    %629 = vmatprep.subr.mxu0 0.0
    %630 = vmatpush1.msra.mxu0 0.0
    %631 = vmatprep.subr.mxu0 0.0
    %632 = vmatpush1.msra.mxu0 0.0
    %633 = vmatprep.mubr.f32.mxu0 0.0
    %634 = vmatmul.mubr.f32.gmra.mrb[0].mxu0 %v567
    %v635 = vpop.f32.mrb[0].mxu0
    %v636 = vadd.f32 0.0, %v635
    %v637 = vpop.f32.mrb[0].mxu0
    %638 = vdwg.mxu0
    %v639 = vmul.f32 %v636, 0.001953125
    %640 = vmatprep.subr.mxu0 0.0
    %641 = vmatpush1.msra.mxu0 %v76
    %642 = vmatprep.subr.mxu0 0.0
    %643 = vmatpush1.msra.mxu0 %v77
    %644 = vmatprep.subr.mxu0 0.0
    %645 = vmatpush1.msra.mxu0 %v78
    %646 = vmatprep.subr.mxu0 0.0
    %647 = vmatpush1.msra.mxu0 %v79
    %648 = vmatprep.subr.mxu0 0.0
    %649 = vmatpush1.msra.mxu0 %v80
    %650 = vmatprep.subr.mxu0 0.0
    %651 = vmatpush1.msra.mxu0 %v81
    %652 = vmatprep.subr.mxu0 0.0
    %653 = vmatpush1.msra.mxu0 %v82
    %654 = vmatprep.subr.mxu0 0.0
    %655 = vmatpush1.msra.mxu0 %v83
    %656 = vmatprep.subr.mxu0 0.0
    %657 = vmatpush1.msra.mxu0 %v84
    %658 = vmatprep.subr.mxu0 0.0
    %659 = vmatpush1.msra.mxu0 %v85
    %660 = vmatprep.subr.mxu0 0.0
    %661 = vmatpush1.msra.mxu0 %v86
    %662 = vmatprep.subr.mxu0 0.0
    %663 = vmatpush1.msra.mxu0 %v87
    %664 = vmatprep.subr.mxu0 0.0
    %665 = vmatpush1.msra.mxu0 %v88
    %666 = vmatprep.subr.mxu0 0.0
    %667 = vmatpush1.msra.mxu0 %v89
    %668 = vmatprep.subr.mxu0 0.0
    %669 = vmatpush1.msra.mxu0 %v90
    %670 = vmatprep.subr.mxu0 0.0
    %671 = vmatpush1.msra.mxu0 %v91
    %672 = vmatprep.subr.mxu0 0.0
    %673 = vmatpush1.msra.mxu0 0.0
    %674 = vmatprep.subr.mxu0 0.0
    %675 = vmatpush1.msra.mxu0 0.0
    %676 = vmatprep.subr.mxu0 0.0
    %677 = vmatpush1.msra.mxu0 0.0
    %678 = vmatprep.subr.mxu0 0.0
    %679 = vmatpush1.msra.mxu0 0.0
    %680 = vmatprep.subr.mxu0 0.0
    %681 = vmatpush1.msra.mxu0 0.0
    %682 = vmatprep.subr.mxu0 0.0
    %683 = vmatpush1.msra.mxu0 0.0
    %684 = vmatprep.subr.mxu0 0.0
    %685 = vmatpush1.msra.mxu0 0.0
    %686 = vmatprep.subr.mxu0 0.0
    %687 = vmatpush1.msra.mxu0 0.0
    %688 = vmatprep.subr.mxu0 0.0
    %689 = vmatpush1.msra.mxu0 0.0
    %690 = vmatprep.subr.mxu0 0.0
    %691 = vmatpush1.msra.mxu0 0.0
    %692 = vmatprep.subr.mxu0 0.0
    %693 = vmatpush1.msra.mxu0 0.0
    %694 = vmatprep.subr.mxu0 0.0
    %695 = vmatpush1.msra.mxu0 0.0
    %696 = vmatprep.subr.mxu0 0.0
    %697 = vmatpush1.msra.mxu0 0.0
    %698 = vmatprep.subr.mxu0 0.0
    %699 = vmatpush1.msra.mxu0 0.0
    %700 = vmatprep.subr.mxu0 0.0
    %701 = vmatpush1.msra.mxu0 0.0
    %702 = vmatprep.subr.mxu0 0.0
    %703 = vmatpush1.msra.mxu0 0.0
    %704 = vmatprep.mubr.f32.mxu0 0.0
    %705 = vmatmul.mubr.f32.gmra.mrb[0].mxu0 %v494
    %v706 = vpop.f32.mrb[0].mxu0
    %v707 = vadd.f32 0.0, %v706
    %v708 = vpop.f32.mrb[0].mxu0
    %709 = vdwg.mxu0
    %v711 = vsel %vm565, %v707, 0
    %713 = vmatprep.subr.mxu0 0.0
    %714 = vmatpush1.msra.mxu0 %v92
    %715 = vmatprep.subr.mxu0 0.0
    %716 = vmatpush1.msra.mxu0 0.0
    %717 = vmatprep.subr.mxu0 0.0
    %718 = vmatpush1.msra.mxu0 0.0
    %719 = vmatprep.subr.mxu0 0.0
    %720 = vmatpush1.msra.mxu0 0.0
    %721 = vmatprep.subr.mxu0 0.0
    %722 = vmatpush1.msra.mxu0 0.0
    %723 = vmatprep.subr.mxu0 0.0
    %724 = vmatpush1.msra.mxu0 0.0
    %725 = vmatprep.subr.mxu0 0.0
    %726 = vmatpush1.msra.mxu0 0.0
    %727 = vmatprep.subr.mxu0 0.0
    %728 = vmatpush1.msra.mxu0 0.0
    %729 = vmatprep.subr.mxu0 0.0
    %730 = vmatpush1.msra.mxu0 0.0
    %731 = vmatprep.subr.mxu0 0.0
    %732 = vmatpush1.msra.mxu0 0.0
    %733 = vmatprep.subr.mxu0 0.0
    %734 = vmatpush1.msra.mxu0 0.0
    %735 = vmatprep.subr.mxu0 0.0
    %736 = vmatpush1.msra.mxu0 0.0
    %737 = vmatprep.subr.mxu0 0.0
    %738 = vmatpush1.msra.mxu0 0.0
    %739 = vmatprep.subr.mxu0 0.0
    %740 = vmatpush1.msra.mxu0 0.0
    %741 = vmatprep.subr.mxu0 0.0
    %742 = vmatpush1.msra.mxu0 0.0
    %743 = vmatprep.subr.mxu0 0.0
    %744 = vmatpush1.msra.mxu0 0.0
    %745 = vmatprep.subr.mxu0 0.0
    %746 = vmatpush1.msra.mxu0 0.0
    %747 = vmatprep.subr.mxu0 0.0
    %748 = vmatpush1.msra.mxu0 0.0
    %749 = vmatprep.subr.mxu0 0.0
    %750 = vmatpush1.msra.mxu0 0.0
    %751 = vmatprep.subr.mxu0 0.0
    %752 = vmatpush1.msra.mxu0 0.0
    %753 = vmatprep.subr.mxu0 0.0
    %754 = vmatpush1.msra.mxu0 0.0
    %755 = vmatprep.subr.mxu0 0.0
    %756 = vmatpush1.msra.mxu0 0.0
    %757 = vmatprep.subr.mxu0 0.0
    %758 = vmatpush1.msra.mxu0 0.0
    %759 = vmatprep.subr.mxu0 0.0
    %760 = vmatpush1.msra.mxu0 0.0
    %761 = vmatprep.subr.mxu0 0.0
    %762 = vmatpush1.msra.mxu0 0.0
    %763 = vmatprep.subr.mxu0 0.0
    %764 = vmatpush1.msra.mxu0 0.0
    %765 = vmatprep.subr.mxu0 0.0
    %766 = vmatpush1.msra.mxu0 0.0
    %767 = vmatprep.subr.mxu0 0.0
    %768 = vmatpush1.msra.mxu0 0.0
    %769 = vmatprep.subr.mxu0 0.0
    %770 = vmatpush1.msra.mxu0 0.0
    %771 = vmatprep.subr.mxu0 0.0
    %772 = vmatpush1.msra.mxu0 0.0
    %773 = vmatprep.subr.mxu0 0.0
    %774 = vmatpush1.msra.mxu0 0.0
    %775 = vmatprep.subr.mxu0 0.0
    %776 = vmatpush1.msra.mxu0 0.0
    %777 = vmatprep.mubr.f32.mxu0 0.0
    %778 = vmatmul.mubr.f32.gmra.mrb[0].mxu0 %v711
    %v779 = vpop.f32.mrb[0].mxu0
    %v780 = vadd.f32 0.0, %v779
    %v781 = vpop.f32.mrb[0].mxu0
    %782 = vdwg.mxu0
    %v783 = vmul.f32 %v780, 0.001953125
    %v784 = vmul.f32 %v639, %v639
    %v785 = vsub.f32 %v783, %v784
    %v786 = vmax.f32 %v785, 0.0
    %v787 = vadd.f32 %v786, 1e-05
    %v788 = vrsqrt.pop %v787
    %v789 = vmul.f32 %v788, %v471
    %v790 = vlaneseq
    %v791 = vshrl.u32 %v790, 7
    %v792 = vsub.s32 0, %v791
    %v793 = vrot.slane %v639, %v792
    %v794 = vsub.f32 %v457, %v793
    %v795 = vsub.f32 %v460, %v793
    %v796 = vsub.f32 %v465, %v793
    %v797 = vsub.f32 %v468, %v793
    %v798 = vlaneseq
    %v799 = vshrl.u32 %v798, 7
    %v800 = vsub.s32 0, %v799
    %v801 = vrot.slane %v789, %v800
    %v802 = vmul.f32 %v794, %v801
    %v803 = vmul.f32 %v795, %v801
    %v804 = vmul.f32 %v796, %v801
    %v805 = vmul.f32 %v797, %v801
    %v807 = vlaneseq
    %v808 = vshrl.u32 %v807, 7
    %v809 = vsub.s32 0, %v808
    %v810 = vrot.slane %v472, %v809
    %v812 = vadd.f32 %v802, %v810
    %v813 = vadd.f32 %v803, %v810
    %v814 = vadd.f32 %v804, %v810
    %v815 = vadd.f32 %v805, %v810
    %v816 = vmax.f32 %v812, 0.0
    %v817 = vmax.f32 %v813, 0.0
    %v818 = vmax.f32 %v814, 0.0
    %v819 = vmax.f32 %v815, 0.0
    %v824 = vrot.slane %v816, 7
    %v825 = vrot.slane %v817, 7
    %v826 = vsel %vm101, %v824, %v825
    %v827 = vrot.slane %v818, 7
    %v828 = vsel %vm101, %v825, %v827
    %v829 = vrot.slane %v819, 7
    %v830 = vsel %vm101, %v827, %v829
    %v835 = vsel %vm101, %v816, %v824
    %v836 = vmul.f32 %v835, %v117
    %v837 = vmul.f32 %v826, %v122
    %v838 = vmul.f32 %v828, %v127
    %v839 = vmul.f32 %v830, %v132
    %v840 = vrot.slane %v816, 1
    %v841 = vrot.slane %v817, 1
    %v842 = vsel %vm138, %v840, %v841
    %v843 = vrot.slane %v818, 1
    %v844 = vsel %vm138, %v841, %v843
    %v845 = vrot.slane %v819, 1
    %v846 = vsel %vm138, %v843, %v845
    %v851 = vsel %vm138, %v845, %v819
    %v852 = vmul.f32 %v842, %v154
    %v853 = vmul.f32 %v844, %v159
    %v854 = vmul.f32 %v846, %v164
    %v855 = vmul.f32 %v851, %v169
    %v856 = vpack.c.bf16 %v837, %v836
    %v857 = vpack.c.bf16 %v839, %v838
    %v858 = vpack.c.bf16 %v817, %v816
    %v859 = vpack.c.bf16 %v819, %v818
    %v860 = vpack.c.bf16 %v853, %v852
    %v861 = vpack.c.bf16 %v855, %v854
    %v862 = vld [vmem:[#allocation5] sm:$0xf]
    %v863 = vld [vmem:[#allocation5 + $0x4] sm:$0xf]
    %v864 = vld [vmem:[#allocation5 + $0x8] sm:$0xf]
    %v865 = vld [vmem:[#allocation5 + $0xc] sm:$0xf]
    %v866 = vld [vmem:[#allocation5 + $0x10] sm:$0xf]
    %v867 = vld [vmem:[#allocation5 + $0x14] sm:$0xf]
    %v868 = vld [vmem:[#allocation5 + $0x18] sm:$0xf]
    %v869 = vld [vmem:[#allocation5 + $0x1c] sm:$0xf]
    %v870 = vld [vmem:[#allocation5 + $0x20] sm:$0xf]
    %v871 = vld [vmem:[#allocation5 + $0x24] sm:$0xf]
    %v872 = vld [vmem:[#allocation5 + $0x28] sm:$0xf]
    %v873 = vld [vmem:[#allocation5 + $0x2c] sm:$0xf]
    %v874 = vld [vmem:[#allocation5 + $0x30] sm:$0xf]
    %v875 = vld [vmem:[#allocation5 + $0x34] sm:$0xf]
    %v876 = vld [vmem:[#allocation5 + $0x38] sm:$0xf]
    %v877 = vld [vmem:[#allocation5 + $0x3c] sm:$0xf]
    %v878 = vld [vmem:[#allocation5 + $0x40] sm:$0xf]
    %v879 = vld [vmem:[#allocation5 + $0x44] sm:$0xf]
    %v880 = vld [vmem:[#allocation5 + $0x48] sm:$0xf]
    %v881 = vld [vmem:[#allocation5 + $0x4c] sm:$0xf]
    %v882 = vld [vmem:[#allocation5 + $0x50] sm:$0xf]
    %v883 = vld [vmem:[#allocation5 + $0x54] sm:$0xf]
    %v884 = vld [vmem:[#allocation5 + $0x58] sm:$0xf]
    %v885 = vld [vmem:[#allocation5 + $0x5c] sm:$0xf]
    %v886 = vld [vmem:[#allocation5 + $0x60] sm:$0xf]
    %v887 = vld [vmem:[#allocation5 + $0x64] sm:$0xf]
    %v888 = vld [vmem:[#allocation5 + $0x68] sm:$0xf]
    %v889 = vld [vmem:[#allocation5 + $0x6c] sm:$0xf]
    %v890 = vld [vmem:[#allocation5 + $0x70] sm:$0xf]
    %v891 = vld [vmem:[#allocation5 + $0x74] sm:$0xf]
    %v892 = vld [vmem:[#allocation5 + $0x78] sm:$0xf]
    %v893 = vld [vmem:[#allocation5 + $0x7c] sm:$0xf]
    %v894 = vld [vmem:[#allocation5 + $0x80] sm:$0xf]
    %v895 = vld [vmem:[#allocation5 + $0x84] sm:$0xf]
    %v896 = vld [vmem:[#allocation5 + $0x88] sm:$0xf]
    %v897 = vld [vmem:[#allocation5 + $0x8c] sm:$0xf]
    %v898 = vld [vmem:[#allocation5 + $0x90] sm:$0xf]
    %v899 = vld [vmem:[#allocation5 + $0x94] sm:$0xf]
    %v900 = vld [vmem:[#allocation5 + $0x98] sm:$0xf]
    %v901 = vld [vmem:[#allocation5 + $0x9c] sm:$0xf]
    %v902 = vld [vmem:[#allocation5 + $0xa0] sm:$0xf]
    %v903 = vld [vmem:[#allocation5 + $0xa4] sm:$0xf]
    %v904 = vld [vmem:[#allocation5 + $0xa8] sm:$0xf]
    %v905 = vld [vmem:[#allocation5 + $0xac] sm:$0xf]
    %v906 = vld [vmem:[#allocation5 + $0xb0] sm:$0xf]
    %v907 = vld [vmem:[#allocation5 + $0xb4] sm:$0xf]
    %v908 = vld [vmem:[#allocation5 + $0xb8] sm:$0xf]
    %v909 = vld [vmem:[#allocation5 + $0xbc] sm:$0xf]
    %v958 = vunpack.c.l.b16 %v862
    %v959 = vunpack.c.l.b16 %v863
    %v960 = vunpack.c.l.b16 %v864
    %v961 = vunpack.c.l.b16 %v865
    %v962 = vunpack.c.l.b16 %v866
    %v963 = vunpack.c.l.b16 %v867
    %v964 = vunpack.c.l.b16 %v868
    %v965 = vunpack.c.l.b16 %v869
    %v966 = vunpack.c.l.b16 %v870
    %v967 = vunpack.c.l.b16 %v871
    %v968 = vunpack.c.l.b16 %v872
    %v969 = vunpack.c.l.b16 %v873
    %v970 = vunpack.c.l.b16 %v874
    %v971 = vunpack.c.l.b16 %v875
    %v972 = vunpack.c.l.b16 %v876
    %v973 = vunpack.c.l.b16 %v877
    %v974 = vunpack.c.l.b16 %v878
    %v975 = vunpack.c.l.b16 %v879
    %v976 = vunpack.c.l.b16 %v880
    %v977 = vunpack.c.l.b16 %v881
    %v978 = vunpack.c.l.b16 %v882
    %v979 = vunpack.c.l.b16 %v883
    %v980 = vunpack.c.l.b16 %v884
    %v981 = vunpack.c.l.b16 %v885
    %v982 = vunpack.c.l.b16 %v886
    %v983 = vunpack.c.l.b16 %v887
    %v984 = vunpack.c.l.b16 %v888
    %v985 = vunpack.c.l.b16 %v889
    %v986 = vunpack.c.l.b16 %v890
    %v987 = vunpack.c.l.b16 %v891
    %v988 = vunpack.c.l.b16 %v892
    %v989 = vunpack.c.l.b16 %v893
    %v990 = vunpack.c.l.b16 %v894
    %v991 = vunpack.c.l.b16 %v895
    %v992 = vunpack.c.l.b16 %v896
    %v993 = vunpack.c.l.b16 %v897
    %v994 = vunpack.c.l.b16 %v898
    %v995 = vunpack.c.l.b16 %v899
    %v996 = vunpack.c.l.b16 %v900
    %v997 = vunpack.c.l.b16 %v901
    %v998 = vunpack.c.l.b16 %v902
    %v999 = vunpack.c.l.b16 %v903
    %v1000 = vunpack.c.l.b16 %v904
    %v1001 = vunpack.c.l.b16 %v905
    %v1002 = vunpack.c.l.b16 %v906
    %v1003 = vunpack.c.l.b16 %v907
    %v1004 = vunpack.c.l.b16 %v908
    %v1005 = vunpack.c.l.b16 %v909
    %v1006 = vpack.c.b16 %v959, %v958
    %v1007 = vpack.c.b16 %v961, %v960
    %v1008 = vpack.c.b16 %v963, %v962
    %v1009 = vpack.c.b16 %v965, %v964
    %v1010 = vpack.c.b16 %v967, %v966
    %v1011 = vpack.c.b16 %v969, %v968
    %v1012 = vpack.c.b16 %v971, %v970
    %v1013 = vpack.c.b16 %v973, %v972
    %v1014 = vpack.c.b16 %v975, %v974
    %v1015 = vpack.c.b16 %v977, %v976
    %v1016 = vpack.c.b16 %v979, %v978
    %v1017 = vpack.c.b16 %v981, %v980
    %v1018 = vpack.c.b16 %v983, %v982
    %v1019 = vpack.c.b16 %v985, %v984
    %v1020 = vpack.c.b16 %v987, %v986
    %v1021 = vpack.c.b16 %v989, %v988
    %v1022 = vpack.c.b16 %v991, %v990
    %v1023 = vpack.c.b16 %v993, %v992
    %v1024 = vpack.c.b16 %v995, %v994
    %v1025 = vpack.c.b16 %v997, %v996
    %v1026 = vpack.c.b16 %v999, %v998
    %v1027 = vpack.c.b16 %v1001, %v1000
    %v1028 = vpack.c.b16 %v1003, %v1002
    %v1029 = vpack.c.b16 %v1005, %v1004
    %1054 = vmatprep.subr.bf16.mxu0 0
    %1055 = vmatpush1.bf16.msra.mxu0 %v1006
    %1056 = vmatprep.subr.bf16.mxu0 0
    %1057 = vmatpush1.bf16.msra.mxu0 %v1007
    %1058 = vmatprep.subr.bf16.mxu0 0
    %1059 = vmatpush1.bf16.msra.mxu0 %v1008
    %1060 = vmatprep.subr.bf16.mxu0 0
    %1061 = vmatpush1.bf16.msra.mxu0 %v1009
    %1062 = vmatprep.subr.bf16.mxu0 0
    %1063 = vmatpush1.bf16.msra.mxu0 %v1010
    %1064 = vmatprep.subr.bf16.mxu0 0
    %1065 = vmatpush1.bf16.msra.mxu0 %v1011
    %1066 = vmatprep.subr.bf16.mxu0 0
    %1067 = vmatpush1.bf16.msra.mxu0 %v1012
    %1068 = vmatprep.subr.bf16.mxu0 0
    %1069 = vmatpush1.bf16.msra.mxu0 %v1013
    %1070 = vmatprep.subr.bf16.mxu0 0
    %1071 = vmatpush1.bf16.msra.mxu0 %v1014
    %1072 = vmatprep.subr.bf16.mxu0 0
    %1073 = vmatpush1.bf16.msra.mxu0 %v1015
    %1074 = vmatprep.subr.bf16.mxu0 0
    %1075 = vmatpush1.bf16.msra.mxu0 %v1016
    %1076 = vmatprep.subr.bf16.mxu0 0
    %1077 = vmatpush1.bf16.msra.mxu0 %v1017
    %1078 = vmatprep.subr.bf16.mxu0 0
    %1079 = vmatpush1.bf16.msra.mxu0 %v1018
    %1080 = vmatprep.subr.bf16.mxu0 0
    %1081 = vmatpush1.bf16.msra.mxu0 %v1019
    %1082 = vmatprep.subr.bf16.mxu0 0
    %1083 = vmatpush1.bf16.msra.mxu0 %v1020
    %1084 = vmatprep.subr.bf16.mxu0 0
    %1085 = vmatpush1.bf16.msra.mxu0 %v1021
    %1086 = vmatprep.mubr.bf16.mxu0 %v858
    %1087 = vmatmul.mubr.bf16.gmra.mrb[0].mxu0 %v856
    %v1088 = vpop.f32.mrb[0].mxu0
    %v1089 = vadd.f32 0.0, %v1088
    %v1090 = vpop.f32.mrb[0].mxu0
    %v1091 = vpop.f32.mrb[0].mxu0
    %v1092 = vadd.f32 0.0, %v1091
    %v1093 = vpop.f32.mrb[0].mxu0
    %1094 = vmatprep.mubr.bf16.mxu0 %v859
    %1095 = vmatmul.mubr.bf16.gmra.mrb[0].mxu0 %v857
    %v1096 = vpop.f32.mrb[0].mxu0
    %v1097 = vadd.f32 0.0, %v1096
    %v1098 = vpop.f32.mrb[0].mxu0
    %v1099 = vpop.f32.mrb[0].mxu0
    %v1100 = vadd.f32 0.0, %v1099
    %v1101 = vpop.f32.mrb[0].mxu0
    %1102 = vdwg.mxu0
    %1103 = vmatprep.subr.bf16.mxu0 0
    %1104 = vmatpush1.bf16.msra.mxu0 %v1022
    %1105 = vmatprep.subr.bf16.mxu0 0
    %1106 = vmatpush1.bf16.msra.mxu0 %v1023
    %1107 = vmatprep.subr.bf16.mxu0 0
    %1108 = vmatpush1.bf16.msra.mxu0 %v1024
    %1109 = vmatprep.subr.bf16.mxu0 0
    %1110 = vmatpush1.bf16.msra.mxu0 %v1025
    %1111 = vmatprep.subr.bf16.mxu0 0
    %1112 = vmatpush1.bf16.msra.mxu0 %v1026
    %1113 = vmatprep.subr.bf16.mxu0 0
    %1114 = vmatpush1.bf16.msra.mxu0 %v1027
    %1115 = vmatprep.subr.bf16.mxu0 0
    %1116 = vmatpush1.bf16.msra.mxu0 %v1028
    %1117 = vmatprep.subr.bf16.mxu0 0
    %1118 = vmatpush1.bf16.msra.mxu0 %v1029
    %1119 = vmatprep.subr.bf16.mxu0 0
    %1120 = vmatpush1.bf16.msra.mxu0 0
    %1121 = vmatprep.subr.bf16.mxu0 0
    %1122 = vmatpush1.bf16.msra.mxu0 0
    %1123 = vmatprep.subr.bf16.mxu0 0
    %1124 = vmatpush1.bf16.msra.mxu0 0
    %1125 = vmatprep.subr.bf16.mxu0 0
    %1126 = vmatpush1.bf16.msra.mxu0 0
    %1127 = vmatprep.subr.bf16.mxu0 0
    %1128 = vmatpush1.bf16.msra.mxu0 0
    %1129 = vmatprep.subr.bf16.mxu0 0
    %1130 = vmatpush1.bf16.msra.mxu0 0
    %1131 = vmatprep.subr.bf16.mxu0 0
    %1132 = vmatpush1.bf16.msra.mxu0 0
    %1133 = vmatprep.subr.bf16.mxu0 0
    %1134 = vmatpush1.bf16.msra.mxu0 0
    %1135 = vmatprep.mubr.bf16.mxu0 0
    %1136 = vmatmul.mubr.bf16.gmra.mrb[0].mxu0 %v860
    %v1137 = vpop.f32.mrb[0].mxu0
    %v1138 = vadd.f32 %v1089, %v1137
    %v1139 = vpop.f32.mrb[0].mxu0
    %v1140 = vpop.f32.mrb[0].mxu0
    %v1141 = vadd.f32 %v1092, %v1140
    %v1142 = vpop.f32.mrb[0].mxu0
    %1143 = vmatprep.mubr.bf16.mxu0 0
    %1144 = vmatmul.mubr.bf16.gmra.mrb[0].mxu0 %v861
    %v1145 = vpop.f32.mrb[0].mxu0
    %v1146 = vadd.f32 %v1097, %v1145
    %v1147 = vpop.f32.mrb[0].mxu0
    %v1148 = vpop.f32.mrb[0].mxu0
    %v1149 = vadd.f32 %v1100, %v1148
    %v1150 = vpop.f32.mrb[0].mxu0
    %1151 = vdwg.mxu0
    %v1152 = vld [vmem:[%s7] sm:$0x1]
    %v1153 = vld [vmem:[%s8] sm:$0x1]
    %v1154 = vadd.f32 %v1138, %v1141
    %v1155 = vadd.f32 %v1154, %v1146
    %v1156 = vadd.f32 %v1155, %v1149
    %v1157 = vrot.slane %v1156, 4
    %v1158 = vadd.f32 %v1156, %v1157
    %v1159 = vrot.slane %v1158, 2
    %v1160 = vadd.f32 %v1158, %v1159
    %v1161 = vrot.slane %v1160, 1
    %v1162 = vadd.f32 %v1160, %v1161
    %v1163 = vmul.f32 %v1138, %v1138
    %v1164 = vmul.f32 %v1141, %v1141
    %v1165 = vmul.f32 %v1146, %v1146
    %v1166 = vmul.f32 %v1149, %v1149
    %v1167 = vadd.f32 %v1163, %v1164
    %v1168 = vadd.f32 %v1167, %v1165
    %v1169 = vadd.f32 %v1168, %v1166
    %v1170 = vrot.slane %v1169, 4
    %v1171 = vadd.f32 %v1169, %v1170
    %v1172 = vrot.slane %v1171, 2
    %v1173 = vadd.f32 %v1171, %v1172
    %v1174 = vrot.slane %v1173, 1
    %v1175 = vadd.f32 %v1173, %v1174
    %1176 = vmatprep.subr.mxu0 0.0
    %1177 = vmatpush1.msra.mxu0 %v76
    %1178 = vmatprep.subr.mxu0 0.0
    %1179 = vmatpush1.msra.mxu0 %v77
    %1180 = vmatprep.subr.mxu0 0.0
    %1181 = vmatpush1.msra.mxu0 %v78
    %1182 = vmatprep.subr.mxu0 0.0
    %1183 = vmatpush1.msra.mxu0 %v79
    %1184 = vmatprep.subr.mxu0 0.0
    %1185 = vmatpush1.msra.mxu0 %v80
    %1186 = vmatprep.subr.mxu0 0.0
    %1187 = vmatpush1.msra.mxu0 %v81
    %1188 = vmatprep.subr.mxu0 0.0
    %1189 = vmatpush1.msra.mxu0 %v82
    %1190 = vmatprep.subr.mxu0 0.0
    %1191 = vmatpush1.msra.mxu0 %v83
    %1192 = vmatprep.subr.mxu0 0.0
    %1193 = vmatpush1.msra.mxu0 %v84
    %1194 = vmatprep.subr.mxu0 0.0
    %1195 = vmatpush1.msra.mxu0 %v85
    %1196 = vmatprep.subr.mxu0 0.0
    %1197 = vmatpush1.msra.mxu0 %v86
    %1198 = vmatprep.subr.mxu0 0.0
    %1199 = vmatpush1.msra.mxu0 %v87
    %1200 = vmatprep.subr.mxu0 0.0
    %1201 = vmatpush1.msra.mxu0 %v88
    %1202 = vmatprep.subr.mxu0 0.0
    %1203 = vmatpush1.msra.mxu0 %v89
    %1204 = vmatprep.subr.mxu0 0.0
    %1205 = vmatpush1.msra.mxu0 %v90
    %1206 = vmatprep.subr.mxu0 0.0
    %1207 = vmatpush1.msra.mxu0 %v91
    %1208 = vmatprep.subr.mxu0 0.0
    %1209 = vmatpush1.msra.mxu0 0.0
    %1210 = vmatprep.subr.mxu0 0.0
    %1211 = vmatpush1.msra.mxu0 0.0
    %1212 = vmatprep.subr.mxu0 0.0
    %1213 = vmatpush1.msra.mxu0 0.0
    %1214 = vmatprep.subr.mxu0 0.0
    %1215 = vmatpush1.msra.mxu0 0.0
    %1216 = vmatprep.subr.mxu0 0.0
    %1217 = vmatpush1.msra.mxu0 0.0
    %1218 = vmatprep.subr.mxu0 0.0
    %1219 = vmatpush1.msra.mxu0 0.0
    %1220 = vmatprep.subr.mxu0 0.0
    %1221 = vmatpush1.msra.mxu0 0.0
    %1222 = vmatprep.subr.mxu0 0.0
    %1223 = vmatpush1.msra.mxu0 0.0
    %1224 = vmatprep.subr.mxu0 0.0
    %1225 = vmatpush1.msra.mxu0 0.0
    %1226 = vmatprep.subr.mxu0 0.0
    %1227 = vmatpush1.msra.mxu0 0.0
    %1228 = vmatprep.subr.mxu0 0.0
    %1229 = vmatpush1.msra.mxu0 0.0
    %1230 = vmatprep.subr.mxu0 0.0
    %1231 = vmatpush1.msra.mxu0 0.0
    %1232 = vmatprep.subr.mxu0 0.0
    %1233 = vmatpush1.msra.mxu0 0.0
    %1234 = vmatprep.subr.mxu0 0.0
    %1235 = vmatpush1.msra.mxu0 0.0
    %1236 = vmatprep.subr.mxu0 0.0
    %1237 = vmatpush1.msra.mxu0 0.0
    %1238 = vmatprep.subr.mxu0 0.0
    %1239 = vmatpush1.msra.mxu0 0.0
    %1240 = vmatprep.mubr.f32.mxu0 0.0
    %1241 = vmatmul.mubr.f32.gmra.mrb[0].mxu0 %v1162
    %v1242 = vpop.f32.mrb[0].mxu0
    %v1243 = vadd.f32 0.0, %v1242
    %v1244 = vpop.f32.mrb[0].mxu0
    %1245 = vdwg.mxu0
    %v1247 = vsel %vm565, %v1243, 0
    %1249 = vmatprep.subr.mxu0 0.0
    %1250 = vmatpush1.msra.mxu0 %v92
    %1251 = vmatprep.subr.mxu0 0.0
    %1252 = vmatpush1.msra.mxu0 0.0
    %1253 = vmatprep.subr.mxu0 0.0
    %1254 = vmatpush1.msra.mxu0 0.0
    %1255 = vmatprep.subr.mxu0 0.0
    %1256 = vmatpush1.msra.mxu0 0.0
    %1257 = vmatprep.subr.mxu0 0.0
    %1258 = vmatpush1.msra.mxu0 0.0
    %1259 = vmatprep.subr.mxu0 0.0
    %1260 = vmatpush1.msra.mxu0 0.0
    %1261 = vmatprep.subr.mxu0 0.0
    %1262 = vmatpush1.msra.mxu0 0.0
    %1263 = vmatprep.subr.mxu0 0.0
    %1264 = vmatpush1.msra.mxu0 0.0
    %1265 = vmatprep.subr.mxu0 0.0
    %1266 = vmatpush1.msra.mxu0 0.0
    %1267 = vmatprep.subr.mxu0 0.0
    %1268 = vmatpush1.msra.mxu0 0.0
    %1269 = vmatprep.subr.mxu0 0.0
    %1270 = vmatpush1.msra.mxu0 0.0
    %1271 = vmatprep.subr.mxu0 0.0
    %1272 = vmatpush1.msra.mxu0 0.0
    %1273 = vmatprep.subr.mxu0 0.0
    %1274 = vmatpush1.msra.mxu0 0.0
    %1275 = vmatprep.subr.mxu0 0.0
    %1276 = vmatpush1.msra.mxu0 0.0
    %1277 = vmatprep.subr.mxu0 0.0
    %1278 = vmatpush1.msra.mxu0 0.0
    %1279 = vmatprep.subr.mxu0 0.0
    %1280 = vmatpush1.msra.mxu0 0.0
    %1281 = vmatprep.subr.mxu0 0.0
    %1282 = vmatpush1.msra.mxu0 0.0
    %1283 = vmatprep.subr.mxu0 0.0
    %1284 = vmatpush1.msra.mxu0 0.0
    %1285 = vmatprep.subr.mxu0 0.0
    %1286 = vmatpush1.msra.mxu0 0.0
    %1287 = vmatprep.subr.mxu0 0.0
    %1288 = vmatpush1.msra.mxu0 0.0
    %1289 = vmatprep.subr.mxu0 0.0
    %1290 = vmatpush1.msra.mxu0 0.0
    %1291 = vmatprep.subr.mxu0 0.0
    %1292 = vmatpush1.msra.mxu0 0.0
    %1293 = vmatprep.subr.mxu0 0.0
    %1294 = vmatpush1.msra.mxu0 0.0
    %1295 = vmatprep.subr.mxu0 0.0
    %1296 = vmatpush1.msra.mxu0 0.0
    %1297 = vmatprep.subr.mxu0 0.0
    %1298 = vmatpush1.msra.mxu0 0.0
    %1299 = vmatprep.subr.mxu0 0.0
    %1300 = vmatpush1.msra.mxu0 0.0
    %1301 = vmatprep.subr.mxu0 0.0
    %1302 = vmatpush1.msra.mxu0 0.0
    %1303 = vmatprep.subr.mxu0 0.0
    %1304 = vmatpush1.msra.mxu0 0.0
    %1305 = vmatprep.subr.mxu0 0.0
    %1306 = vmatpush1.msra.mxu0 0.0
    %1307 = vmatprep.subr.mxu0 0.0
    %1308 = vmatpush1.msra.mxu0 0.0
    %1309 = vmatprep.subr.mxu0 0.0
    %1310 = vmatpush1.msra.mxu0 0.0
    %1311 = vmatprep.subr.mxu0 0.0
    %1312 = vmatpush1.msra.mxu0 0.0
    %1313 = vmatprep.mubr.f32.mxu0 0.0
    %1314 = vmatmul.mubr.f32.gmra.mrb[0].mxu0 %v1247
    %v1315 = vpop.f32.mrb[0].mxu0
    %v1316 = vadd.f32 0.0, %v1315
    %v1317 = vpop.f32.mrb[0].mxu0
    %1318 = vdwg.mxu0
    %v1319 = vmul.f32 %v1316, 0.001953125
    %1320 = vmatprep.subr.mxu0 0.0
    %1321 = vmatpush1.msra.mxu0 %v76
    %1322 = vmatprep.subr.mxu0 0.0
    %1323 = vmatpush1.msra.mxu0 %v77
    %1324 = vmatprep.subr.mxu0 0.0
    %1325 = vmatpush1.msra.mxu0 %v78
    %1326 = vmatprep.subr.mxu0 0.0
    %1327 = vmatpush1.msra.mxu0 %v79
    %1328 = vmatprep.subr.mxu0 0.0
    %1329 = vmatpush1.msra.mxu0 %v80
    %1330 = vmatprep.subr.mxu0 0.0
    %1331 = vmatpush1.msra.mxu0 %v81
    %1332 = vmatprep.subr.mxu0 0.0
    %1333 = vmatpush1.msra.mxu0 %v82
    %1334 = vmatprep.subr.mxu0 0.0
    %1335 = vmatpush1.msra.mxu0 %v83
    %1336 = vmatprep.subr.mxu0 0.0
    %1337 = vmatpush1.msra.mxu0 %v84
    %1338 = vmatprep.subr.mxu0 0.0
    %1339 = vmatpush1.msra.mxu0 %v85
    %1340 = vmatprep.subr.mxu0 0.0
    %1341 = vmatpush1.msra.mxu0 %v86
    %1342 = vmatprep.subr.mxu0 0.0
    %1343 = vmatpush1.msra.mxu0 %v87
    %1344 = vmatprep.subr.mxu0 0.0
    %1345 = vmatpush1.msra.mxu0 %v88
    %1346 = vmatprep.subr.mxu0 0.0
    %1347 = vmatpush1.msra.mxu0 %v89
    %1348 = vmatprep.subr.mxu0 0.0
    %1349 = vmatpush1.msra.mxu0 %v90
    %1350 = vmatprep.subr.mxu0 0.0
    %1351 = vmatpush1.msra.mxu0 %v91
    %1352 = vmatprep.subr.mxu0 0.0
    %1353 = vmatpush1.msra.mxu0 0.0
    %1354 = vmatprep.subr.mxu0 0.0
    %1355 = vmatpush1.msra.mxu0 0.0
    %1356 = vmatprep.subr.mxu0 0.0
    %1357 = vmatpush1.msra.mxu0 0.0
    %1358 = vmatprep.subr.mxu0 0.0
    %1359 = vmatpush1.msra.mxu0 0.0
    %1360 = vmatprep.subr.mxu0 0.0
    %1361 = vmatpush1.msra.mxu0 0.0
    %1362 = vmatprep.subr.mxu0 0.0
    %1363 = vmatpush1.msra.mxu0 0.0
    %1364 = vmatprep.subr.mxu0 0.0
    %1365 = vmatpush1.msra.mxu0 0.0
    %1366 = vmatprep.subr.mxu0 0.0
    %1367 = vmatpush1.msra.mxu0 0.0
    %1368 = vmatprep.subr.mxu0 0.0
    %1369 = vmatpush1.msra.mxu0 0.0
    %1370 = vmatprep.subr.mxu0 0.0
    %1371 = vmatpush1.msra.mxu0 0.0
    %1372 = vmatprep.subr.mxu0 0.0
    %1373 = vmatpush1.msra.mxu0 0.0
    %1374 = vmatprep.subr.mxu0 0.0
    %1375 = vmatpush1.msra.mxu0 0.0
    %1376 = vmatprep.subr.mxu0 0.0
    %1377 = vmatpush1.msra.mxu0 0.0
    %1378 = vmatprep.subr.mxu0 0.0
    %1379 = vmatpush1.msra.mxu0 0.0
    %1380 = vmatprep.subr.mxu0 0.0
    %1381 = vmatpush1.msra.mxu0 0.0
    %1382 = vmatprep.subr.mxu0 0.0
    %1383 = vmatpush1.msra.mxu0 0.0
    %1384 = vmatprep.mubr.f32.mxu0 0.0
    %1385 = vmatmul.mubr.f32.gmra.mrb[0].mxu0 %v1175
    %v1386 = vpop.f32.mrb[0].mxu0
    %v1387 = vadd.f32 0.0, %v1386
    %v1388 = vpop.f32.mrb[0].mxu0
    %1389 = vdwg.mxu0
    %v1391 = vsel %vm565, %v1387, 0
    %1393 = vmatprep.subr.mxu0 0.0
    %1394 = vmatpush1.msra.mxu0 %v92
    %1395 = vmatprep.subr.mxu0 0.0
    %1396 = vmatpush1.msra.mxu0 0.0
    %1397 = vmatprep.subr.mxu0 0.0
    %1398 = vmatpush1.msra.mxu0 0.0
    %1399 = vmatprep.subr.mxu0 0.0
    %1400 = vmatpush1.msra.mxu0 0.0
    %1401 = vmatprep.subr.mxu0 0.0
    %1402 = vmatpush1.msra.mxu0 0.0
    %1403 = vmatprep.subr.mxu0 0.0
    %1404 = vmatpush1.msra.mxu0 0.0
    %1405 = vmatprep.subr.mxu0 0.0
    %1406 = vmatpush1.msra.mxu0 0.0
    %1407 = vmatprep.subr.mxu0 0.0
    %1408 = vmatpush1.msra.mxu0 0.0
    %1409 = vmatprep.subr.mxu0 0.0
    %1410 = vmatpush1.msra.mxu0 0.0
    %1411 = vmatprep.subr.mxu0 0.0
    %1412 = vmatpush1.msra.mxu0 0.0
    %1413 = vmatprep.subr.mxu0 0.0
    %1414 = vmatpush1.msra.mxu0 0.0
    %1415 = vmatprep.subr.mxu0 0.0
    %1416 = vmatpush1.msra.mxu0 0.0
    %1417 = vmatprep.subr.mxu0 0.0
    %1418 = vmatpush1.msra.mxu0 0.0
    %1419 = vmatprep.subr.mxu0 0.0
    %1420 = vmatpush1.msra.mxu0 0.0
    %1421 = vmatprep.subr.mxu0 0.0
    %1422 = vmatpush1.msra.mxu0 0.0
    %1423 = vmatprep.subr.mxu0 0.0
    %1424 = vmatpush1.msra.mxu0 0.0
    %1425 = vmatprep.subr.mxu0 0.0
    %1426 = vmatpush1.msra.mxu0 0.0
    %1427 = vmatprep.subr.mxu0 0.0
    %1428 = vmatpush1.msra.mxu0 0.0
    %1429 = vmatprep.subr.mxu0 0.0
    %1430 = vmatpush1.msra.mxu0 0.0
    %1431 = vmatprep.subr.mxu0 0.0
    %1432 = vmatpush1.msra.mxu0 0.0
    %1433 = vmatprep.subr.mxu0 0.0
    %1434 = vmatpush1.msra.mxu0 0.0
    %1435 = vmatprep.subr.mxu0 0.0
    %1436 = vmatpush1.msra.mxu0 0.0
    %1437 = vmatprep.subr.mxu0 0.0
    %1438 = vmatpush1.msra.mxu0 0.0
    %1439 = vmatprep.subr.mxu0 0.0
    %1440 = vmatpush1.msra.mxu0 0.0
    %1441 = vmatprep.subr.mxu0 0.0
    %1442 = vmatpush1.msra.mxu0 0.0
    %1443 = vmatprep.subr.mxu0 0.0
    %1444 = vmatpush1.msra.mxu0 0.0
    %1445 = vmatprep.subr.mxu0 0.0
    %1446 = vmatpush1.msra.mxu0 0.0
    %1447 = vmatprep.subr.mxu0 0.0
    %1448 = vmatpush1.msra.mxu0 0.0
    %1449 = vmatprep.subr.mxu0 0.0
    %1450 = vmatpush1.msra.mxu0 0.0
    %1451 = vmatprep.subr.mxu0 0.0
    %1452 = vmatpush1.msra.mxu0 0.0
    %1453 = vmatprep.subr.mxu0 0.0
    %1454 = vmatpush1.msra.mxu0 0.0
    %1455 = vmatprep.subr.mxu0 0.0
    %1456 = vmatpush1.msra.mxu0 0.0
    %1457 = vmatprep.mubr.f32.mxu0 0.0
    %1458 = vmatmul.mubr.f32.gmra.mrb[0].mxu0 %v1391
    %v1459 = vpop.f32.mrb[0].mxu0
    %v1460 = vadd.f32 0.0, %v1459
    %v1461 = vpop.f32.mrb[0].mxu0
    %1462 = vdwg.mxu0
    %v1463 = vmul.f32 %v1460, 0.001953125
    %v1464 = vmul.f32 %v1319, %v1319
    %v1465 = vsub.f32 %v1463, %v1464
    %v1466 = vmax.f32 %v1465, 0.0
    %v1467 = vadd.f32 %v1466, 1e-05
    %v1468 = vrsqrt.pop %v1467
    %v1469 = vmul.f32 %v1468, %v1152
    %v1470 = vlaneseq
    %v1471 = vshrl.u32 %v1470, 7
    %v1472 = vsub.s32 0, %v1471
    %v1473 = vrot.slane %v1319, %v1472
    %v1474 = vsub.f32 %v1138, %v1473
    %v1475 = vsub.f32 %v1141, %v1473
    %v1476 = vsub.f32 %v1146, %v1473
    %v1477 = vsub.f32 %v1149, %v1473
    %v1478 = vlaneseq
    %v1479 = vshrl.u32 %v1478, 7
    %v1480 = vsub.s32 0, %v1479
    %v1481 = vrot.slane %v1469, %v1480
    %v1482 = vmul.f32 %v1474, %v1481
    %v1483 = vmul.f32 %v1475, %v1481
    %v1484 = vmul.f32 %v1476, %v1481
    %v1485 = vmul.f32 %v1477, %v1481
    %v1487 = vlaneseq
    %v1488 = vshrl.u32 %v1487, 7
    %v1489 = vsub.s32 0, %v1488
    %v1490 = vrot.slane %v1153, %v1489
    %v1492 = vadd.f32 %v1482, %v1490
    %v1493 = vadd.f32 %v1483, %v1490
    %v1494 = vadd.f32 %v1484, %v1490
    %v1495 = vadd.f32 %v1485, %v1490
    %v1496 = vadd.f32 %v1492, %v93
    %v1497 = vadd.f32 %v1493, %v94
    %v1498 = vadd.f32 %v1494, %v95
    %v1499 = vadd.f32 %v1495, %v96
    %v1500 = vmax.f32 %v1496, 0.0
    %v1501 = vmax.f32 %v1497, 0.0
    %v1502 = vmax.f32 %v1498, 0.0
    %v1503 = vmax.f32 %v1499, 0.0
    %1504 = vst [vmem:[#allocation7] sm:$0xff] %v1500
    %1505 = vst [vmem:[#allocation7 + $0x8] sm:$0xff] %v1501
    %1506 = vst [vmem:[#allocation7 + $0x10] sm:$0xff] %v1502
    %1507 = vst [vmem:[#allocation7 + $0x18] sm:$0xff] %v1503
    // Predicated region
    $region54: #{tpu_custom_call.1} parent=1 // pred_check
      _
    $region55: #{tpu_custom_call.1} parent=1 // pred_check_branch
      %1509 = sbr.rel (0) target = $region57
    $region56: #{tpu_custom_call.1} parent=1 // pred_region
      %s1511 = ssub.s32 512, 512
      %1512 = vsyncadd [#allocation4], %s1511
      %s1513 = sshll.u32 [#allocation7], 4
      %s1514 = int_to_ptr.vmem [resolvable:$true] %s1513
      %1519 = dma.vmem_to_hbm [thread:$0]  %s1514, 512, %s11, [#allocation4], 128, 128, 8
    $region57: #{tpu_custom_call.1} parent=1 // pred_fallthru
      _
    // Predicated region
    $region58: #{tpu_custom_call.1} parent=1 // pred_check
      _
    $region59: #{tpu_custom_call.1} parent=1 // pred_check_branch
      %1521 = sbr.rel (0) target = $region61
    $region60: #{tpu_custom_call.1} parent=1 // pred_region
      %1522 = dma.done [#allocation4], 512
    $region61: #{tpu_custom_call.1} parent=1 // pred_fallthru
      _
    %1523 = vsyncpa [#allocation3], 1
    %1524 = vsyncpa [#allocation6], 1
    %1525 = vsyncpa [#allocation4], 1

</llo_original>
